<compile_context>
chip_gen: v5e
topology: v5e:2x2
jax: 0.10.0
libtpu: 0.0.40
codegen_flags: <defaults>
</compile_context>

<pallas_src>
import jax
import jax.numpy as jnp
from jax.experimental import pallas as pl
from jax.experimental.pallas import tpu as pltpu


def policy_kernel(x_ref, snr_ref, w1_ref, b1_ref, w2h_ref, w2s_ref, b2_ref, out_ref):
    x = x_ref[...]                                   # (TB, L, n1) f32, streamed
    w1 = w1_ref[...]                                 # (1, n1), VMEM-resident
    b1 = b1_ref[0, 0]                                # SMEM scalar

    # layer1 (output width 1): elementwise mul + lane reduction (VPU + XLU),
    # exactly nn.Linear(n1, 1); avoids a degenerate MXU matmul.
    h = jnp.sum(x * w1[None, :, :], axis=-1) + b1    # (TB, L)
    # torch.squeeze(x) drops the trailing size-1 dim -> already (TB, L) here.
    h = jnp.maximum(h, 0.0)                          # ReLU

    # layer2 on cat([h, snr], axis=1), expressed without an in-kernel concat:
    #   cat @ W2.T == h @ w2_h + snr * w2_s  (snr term stays on the VPU).
    out = (
        jnp.dot(h, w2h_ref[...], preferred_element_type=jnp.float32)
        + snr_ref[...] * w2s_ref[...]                # (TB,1)*(1,3) broadcast
        + b2_ref[...]                                # (1, 3) bias
    )
    out_ref[...] = out.astype(out_ref.dtype)


def policy_forward(x, snr, params, *, block_b=1024):
    """x: (B, L, n1) f32, snr: (B, 1) f32 -> (B, 3) f32."""
    # TODO(synk): torch.squeeze() with no dim removes ALL size-1 dims; this
    # kernel assumes B > 1 and L > 1 (the normal case for this module).
    w1, b1, w2, b2 = params["w1"], params["b1"], params["w2"], params["b2"]
    B, L, n1 = x.shape

    # Batch tile: whole batch if small, otherwise a multiple-of-8-row block
    # (~1 MiB of x per block at L=8, n1=32) so the pipeline hits the
    # >=512-row regime where the kernel approaches the HBM roofline.
    tb = B if B <= block_b else max(8, (block_b // 8) * 8)
    grid = (pl.cdiv(B, tb),)

    w2t = w2.T                                       # (L+1, 3)
    w2_h = w2t[:L, :]                                # (L, 3)
    w2_s = w2t[L:, :]                                # (1, 3)
    b1_ = b1.reshape(1, 1).astype(jnp.float32)
    b2_ = b2.reshape(1, 3).astype(jnp.float32)

    return pl.pallas_call(
        policy_kernel,
        out_shape=jax.ShapeDtypeStruct((B, 3), jnp.float32),
        grid=grid,
        in_specs=[
            pl.BlockSpec((tb, L, n1), lambda i: (i, 0, 0)),          # x: streamed
            pl.BlockSpec((tb, 1), lambda i: (i, 0)),                 # snr: streamed
            pl.BlockSpec((1, n1), lambda i: (0, 0)),                 # w1: resident
            pl.BlockSpec(memory_space=pltpu.MemorySpace.SMEM),       # b1 scalar
            pl.BlockSpec((L, 3), lambda i: (0, 0)),                  # w2_h: resident
            pl.BlockSpec((1, 3), lambda i: (0, 0)),                  # w2_s: resident
            pl.BlockSpec((1, 3), lambda i: (0, 0)),                  # b2: resident
        ],
        out_specs=pl.BlockSpec((tb, 3), lambda i: (i, 0)),
        compiler_params=pltpu.CompilerParams(
            dimension_semantics=("parallel",),       # engages 2nd TC on v7x
            vmem_limit_bytes=32 * 1024 * 1024,       # headroom beyond v5e's 16 MiB default
        ),
    )(x, snr, w1, b1_, w2_h, w2_s, b2_)


def init_params(key, n1, L):
    """Deterministic init matching PyTorch Linear default (U[-1/sqrt(fan_in), +])."""
    k1, k2, k3, k4 = jax.random.split(key, 4)
    bound1 = 1.0 / (n1 ** 0.5)
    bound2 = 1.0 / ((L + 1) ** 0.5)
    return {
        "w1": jax.random.uniform(k1, (1, n1), jnp.float32, -bound1, bound1),
        "b1": jax.random.uniform(k2, (1,), jnp.float32, -bound1, bound1),
        "w2": jax.random.uniform(k3, (3, L + 1), jnp.float32, -bound2, bound2),
        "b2": jax.random.uniform(k4, (3,), jnp.float32, -bound2, bound2),
    }


if __name__ == "__main__":
    # Small shapes consistent with the module: batch B, sequence L, features n1.
    # block_b=128 -> grid of 2 steps so the batch tiling / pipelining path runs.
    B, L, n1 = 256, 8, 32

    key = jax.random.PRNGKey(0)
    kx, ks, kp = jax.random.split(key, 3)
    x = jax.random.normal(kx, (B, L, n1), jnp.float32)
    snr = jax.random.normal(ks, (B, 1), jnp.float32)
    params = init_params(kp, n1, L)

    out = jax.block_until_ready(policy_forward(x, snr, params, block_b=128))

    # Pure-JAX reference for correctness.
    h_ref = jnp.maximum(
        jnp.einsum("bln,n->bl", x, params["w1"][0]) + params["b1"][0], 0.0
    )
    cat_ref = jnp.concatenate([h_ref, snr], axis=1)
    ref = cat_ref @ params["w2"].T + params["b2"]

    assert out.shape == (B, 3), out.shape
    assert jnp.allclose(out, ref, atol=1e-5, rtol=1e-5), jnp.max(jnp.abs(out - ref))
    print("KERNEL_OK")
</pallas_src>

<mosaic_0001>
module attributes {stable_mosaic.version = 11 : i64} {
  func.func @policy_kernel(%arg0: i32, %arg1: memref<128x8x32xf32, #tpu.memory_space<vmem>>, %arg2: memref<128x1xf32, #tpu.memory_space<vmem>>, %arg3: memref<1x32xf32, #tpu.memory_space<vmem>>, %arg4: memref<1x1xf32, #tpu.memory_space<smem>>, %arg5: memref<8x3xf32, #tpu.memory_space<vmem>>, %arg6: memref<1x3xf32, #tpu.memory_space<vmem>>, %arg7: memref<1x3xf32, #tpu.memory_space<vmem>>, %arg8: memref<128x3xf32, #tpu.memory_space<vmem>>) attributes {dimension_semantics = [#tpu.dimension_semantics<parallel>], iteration_bounds = array<i64: 2>, scalar_prefetch = 0 : i64, scratch_operands = 0 : i64, tpu.core_type = #tpu.core_type<tc>, window_params = [{transform_indices = @transform_0, window_bounds = array<i64: 128, 8, 32>}, {transform_indices = @transform_1, window_bounds = array<i64: 128, 1>}, {pipeline_mode = #tpu.pipeline_mode<synchronous>, transform_indices = @transform_2, window_bounds = array<i64: 1, 32>}, {transform_indices = @transform_3, window_bounds = array<i64: 1, 1>}, {pipeline_mode = #tpu.pipeline_mode<synchronous>, transform_indices = @transform_4, window_bounds = array<i64: 8, 3>}, {pipeline_mode = #tpu.pipeline_mode<synchronous>, transform_indices = @transform_5, window_bounds = array<i64: 1, 3>}, {pipeline_mode = #tpu.pipeline_mode<synchronous>, transform_indices = @transform_6, window_bounds = array<i64: 1, 3>}, {transform_indices = @transform_7, window_bounds = array<i64: 128, 3>}]} {
    %c0 = arith.constant 0 : index
    %c0_0 = arith.constant 0 : index
    %c0_1 = arith.constant 0 : index
    %0 = vector.load %arg1[%c0, %c0_0, %c0_1] : memref<128x8x32xf32, #tpu.memory_space<vmem>>, vector<128x8x32xf32>
    %c0_2 = arith.constant 0 : index
    %c0_3 = arith.constant 0 : index
    %1 = vector.load %arg3[%c0_2, %c0_3] : memref<1x32xf32, #tpu.memory_space<vmem>>, vector<1x32xf32>
    %c0_4 = arith.constant 0 : index
    %c0_5 = arith.constant 0 : index
    %2 = memref.load %arg4[%c0_4, %c0_5] : memref<1x1xf32, #tpu.memory_space<smem>>
    %3 = vector.shape_cast %1 : vector<1x32xf32> to vector<1x1x32xf32>
    %4 = vector.broadcast %3 : vector<1x1x32xf32> to vector<128x8x32xf32>
    %5 = arith.mulf %0, %4 : vector<128x8x32xf32>
    %cst = arith.constant dense<0.000000e+00> : vector<128x8xf32>
    %6 = vector.multi_reduction <add>, %5, %cst [2] : vector<128x8x32xf32> to vector<128x8xf32>
    %7 = vector.broadcast %2 : f32 to vector<128x8xf32>
    %8 = arith.addf %6, %7 : vector<128x8xf32>
    %cst_6 = arith.constant 0.000000e+00 : f32
    %9 = vector.broadcast %cst_6 : f32 to vector<128x8xf32>
    %10 = arith.maximumf %8, %9 : vector<128x8xf32>
    %c0_7 = arith.constant 0 : index
    %c0_8 = arith.constant 0 : index
    %11 = vector.load %arg5[%c0_7, %c0_8] : memref<8x3xf32, #tpu.memory_space<vmem>>, vector<8x3xf32>
    %cst_9 = arith.constant dense<0.000000e+00> : vector<128x3xf32>
    %12 = tpu.matmul %10, %11, %cst_9 {dimension_numbers = #tpu.dot_dimension_numbers<[1], [0], [0], [1], [0, 0, 1, 1], [], []>} : vector<128x8xf32>, vector<8x3xf32>, vector<128x3xf32> -> vector<128x3xf32>
    %c0_10 = arith.constant 0 : index
    %c0_11 = arith.constant 0 : index
    %13 = vector.load %arg2[%c0_10, %c0_11] : memref<128x1xf32, #tpu.memory_space<vmem>>, vector<128x1xf32>
    %c0_12 = arith.constant 0 : index
    %c0_13 = arith.constant 0 : index
    %14 = vector.load %arg6[%c0_12, %c0_13] : memref<1x3xf32, #tpu.memory_space<vmem>>, vector<1x3xf32>
    %15 = vector.broadcast %13 : vector<128x1xf32> to vector<128x3xf32>
    %16 = vector.broadcast %14 : vector<1x3xf32> to vector<128x3xf32>
    %17 = arith.mulf %15, %16 : vector<128x3xf32>
    %18 = arith.addf %12, %17 : vector<128x3xf32>
    %c0_14 = arith.constant 0 : index
    %c0_15 = arith.constant 0 : index
    %19 = vector.load %arg7[%c0_14, %c0_15] : memref<1x3xf32, #tpu.memory_space<vmem>>, vector<1x3xf32>
    %20 = vector.broadcast %19 : vector<1x3xf32> to vector<128x3xf32>
    %21 = arith.addf %18, %20 : vector<128x3xf32>
    %c0_16 = arith.constant 0 : index
    %c0_17 = arith.constant 0 : index
    %22 = vector.load %arg8[%c0_16, %c0_17] : memref<128x3xf32, #tpu.memory_space<vmem>>, vector<128x3xf32>
    tpu.vector_store %arg8[%c0_16, %c0_17], %21 {strides = array<i32>} : memref<128x3xf32, #tpu.memory_space<vmem>>, vector<128x3xf32>,
    return
  }
  func.func @transform_0(%arg0: i32) -> (i32, i32, i32) {
    %c0_i32 = arith.constant 0 : i32
    %c0_i32_0 = arith.constant 0 : i32
    %c0_i32_1 = arith.constant 0 : i32
    return %arg0, %c0_i32, %c0_i32_0 : i32, i32, i32
  }
  func.func @transform_1(%arg0: i32) -> (i32, i32) {
    %c0_i32 = arith.constant 0 : i32
    %c0_i32_0 = arith.constant 0 : i32
    return %arg0, %c0_i32 : i32, i32
  }
  func.func @transform_2(%arg0: i32) -> (i32, i32) {
    %c0_i32 = arith.constant 0 : i32
    %c0_i32_0 = arith.constant 0 : i32
    %c0_i32_1 = arith.constant 0 : i32
    return %c0_i32, %c0_i32_0 : i32, i32
  }
  func.func @transform_3(%arg0: i32) -> (i32, i32) {
    %c0_i32 = arith.constant 0 : i32
    %c0_i32_0 = arith.constant 0 : i32
    %c0_i32_1 = arith.constant 0 : i32
    return %c0_i32, %c0_i32_0 : i32, i32
  }
  func.func @transform_4(%arg0: i32) -> (i32, i32) {
    %c0_i32 = arith.constant 0 : i32
    %c0_i32_0 = arith.constant 0 : i32
    %c0_i32_1 = arith.constant 0 : i32
    return %c0_i32, %c0_i32_0 : i32, i32
  }
  func.func @transform_5(%arg0: i32) -> (i32, i32) {
    %c0_i32 = arith.constant 0 : i32
    %c0_i32_0 = arith.constant 0 : i32
    %c0_i32_1 = arith.constant 0 : i32
    return %c0_i32, %c0_i32_0 : i32, i32
  }
  func.func @transform_6(%arg0: i32) -> (i32, i32) {
    %c0_i32 = arith.constant 0 : i32
    %c0_i32_0 = arith.constant 0 : i32
    %c0_i32_1 = arith.constant 0 : i32
    return %c0_i32, %c0_i32_0 : i32, i32
  }
  func.func @transform_7(%arg0: i32) -> (i32, i32) {
    %c0_i32 = arith.constant 0 : i32
    %c0_i32_0 = arith.constant 0 : i32
    return %arg0, %c0_i32 : i32, i32
  }
}

</mosaic_0001>

<llo_original>
// kernel: tpu_custom_call.1
$region0: #{tpu_custom_call.1}
  #allocation0 [shape = 'u32[]', space=smem, size = 0x4, offset = 0x4, fixed_abs, tag = 'smem constant byte address 0x4 - core index']
  #allocation1 [shape = 'u32[72,128]{1,0:T(1,128)}', space=vmem, size = 0x9000, scoped, tag = 'internal scratch']
  #allocation2 [shape = 'f32[1,1]{1,0:T(1,128)S(6)}', space=smem, size = 0x200, scoped, tag = 'scoped memory for tpu_custom_call.1']
  %s0 = inlined_call_operand.vmem [shape: f32[256,8,32], index: 0, kind: input, shape index: {}]
  %s1 = inlined_call_operand.vmem [shape: f32[256,1], index: 1, kind: input, shape index: {}]
  %s2 = inlined_call_operand.vmem [shape: f32[1,32], index: 2, kind: input, shape index: {}]
  %s3 = inlined_call_operand.<no memory space> [shape: f32[1,1], index: 3, kind: input, shape index: {}]
  %s4 = inlined_call_operand.vmem [shape: f32[8,3], index: 4, kind: input, shape index: {}]
  %s5 = inlined_call_operand.vmem [shape: f32[1,3], index: 5, kind: input, shape index: {}]
  %s6 = inlined_call_operand.vmem [shape: f32[1,3], index: 6, kind: input, shape index: {}]
  %s7 = inlined_call_operand.vmem [shape: f32[256,3], index: 7, kind: output, shape index: {}]
  %s8 = sld [smem:[#allocation0]]
  $region61: #{tpu_custom_call.1} parent=0
    _
  %s10 = ssub.s32 1, %s8
  %s11 = scalar_select 0, %s10, %s8
  %12 = sst [smem:[#allocation2]] %s3
  loop: start=0, step=1, limit=4
  $region2: #{tpu_custom_call.1} parent=0 // loop_pre_header
    _
  $region3: #{tpu_custom_call.1} parent=0 // loop_header
    %s14 = sphi 0, %s18
    %p15 = scmp.ge.s32.totalorder %s14, 4
    %s24 = sphi 0, %s26
    %s27 = sphi 0, %s24
    %s28 = sphi 0, %s27
    %s44 = sphi 0, %s28
    %s50 = sphi 0, %s52
    %s53 = sphi 0, %s50
    %s54 = sphi 0, %s53
    %s70 = sphi 0, %s54
    %s74 = sphi 0, %s74
    %s76 = sphi 0, %s74
    %s77 = sphi 0, %s76
    %s91 = sphi 0, %s77
    %s95 = sphi 0, %s95
    %s97 = sphi 0, %s95
    %s98 = sphi 0, %s97
    %s112 = sphi 0, %s98
    %s116 = sphi 0, %s116
    %s118 = sphi 0, %s116
    %s119 = sphi 0, %s118
    %s133 = sphi 0, %s119
    %s137 = sphi 0, %s137
    %s139 = sphi 0, %s137
    %s140 = sphi 0, %s139
    %s154 = sphi 0, %s140
    %s158 = sphi 0, %s158
    %s160 = sphi 0, %s158
    %s161 = sphi 0, %s160
    %s175 = sphi 0, %s161
    %s181 = sphi 0, %s183
    %s184 = sphi 0, %s181
    %s185 = sphi 0, %s184
    %s201 = sphi 0, %s185
  $region4: #{tpu_custom_call.1} parent=0 // loop_header_branch
    %17 = sbr.rel (%p15) target = $region8
  $region5: #{tpu_custom_call.1} parent=0 // loop_body
    %s19 = ssub.s32 %s14, 1
    %s20 = ssub.s32 %s14, 2
    %s21 = sadd.s32 %s14, 1
    %s22 = ssub.s32 %s14, %s21
    %p23 = scmp.eq.s32.totalorder %s22, 0
    %s25 = sadd.s32 %s24, 1
    %s26 = scalar_select %p23, %s24, %s25
    %p29 = pneg %p23
    %p30 = scmp.eq.s32.totalorder %s14, 1
    %p31 = por %p29, %p30
    %p32 = scmp.ne.s32.totalorder %s24, %s27
    %p33 = scmp.eq.s32.totalorder %s14, 0
    %p34 = por %p32, %p33
    %p35 = scmp.ne.s32.totalorder %s24, %s27
    %p36 = scmp.eq.s32.totalorder %s19, 1
    %p37 = por %p35, %p36
    %p38 = scmp.ne.s32.totalorder %s27, %s28
    %p39 = scmp.eq.s32.totalorder %s19, 0
    %p40 = por %p38, %p39
    %p41 = scmp.ne.s32.totalorder %s27, %s28
    %p42 = scmp.eq.s32.totalorder %s20, 1
    %p43 = por %p41, %p42
    %p45 = scmp.ne.s32.totalorder %s28, %s44
    %p46 = scmp.eq.s32.totalorder %s20, 0
    %p47 = por %p45, %p46
    %s48 = ssub.s32 %s14, %s21
    %p49 = scmp.eq.s32.totalorder %s48, 0
    %s51 = sadd.s32 %s50, 1
    %s52 = scalar_select %p49, %s50, %s51
    %p55 = pneg %p49
    %p56 = scmp.eq.s32.totalorder %s14, 1
    %p57 = por %p55, %p56
    %p58 = scmp.ne.s32.totalorder %s50, %s53
    %p59 = scmp.eq.s32.totalorder %s14, 0
    %p60 = por %p58, %p59
    %p61 = scmp.ne.s32.totalorder %s50, %s53
    %p62 = scmp.eq.s32.totalorder %s19, 1
    %p63 = por %p61, %p62
    %p64 = scmp.ne.s32.totalorder %s53, %s54
    %p65 = scmp.eq.s32.totalorder %s19, 0
    %p66 = por %p64, %p65
    %p67 = scmp.ne.s32.totalorder %s53, %s54
    %p68 = scmp.eq.s32.totalorder %s20, 1
    %p69 = por %p67, %p68
    %p71 = scmp.ne.s32.totalorder %s54, %s70
    %p72 = scmp.eq.s32.totalorder %s20, 0
    %p73 = por %p71, %p72
    %s75 = sadd.s32 %s74, 1
    %p78 = scmp.eq.s32.totalorder %s14, 1
    %p79 = scmp.ne.s32.totalorder %s74, %s76
    %p80 = scmp.eq.s32.totalorder %s14, 0
    %p81 = por %p79, %p80
    %p82 = scmp.ne.s32.totalorder %s74, %s76
    %p83 = scmp.eq.s32.totalorder %s19, 1
    %p84 = por %p82, %p83
    %p85 = scmp.ne.s32.totalorder %s76, %s77
    %p86 = scmp.eq.s32.totalorder %s19, 0
    %p87 = por %p85, %p86
    %p88 = scmp.ne.s32.totalorder %s76, %s77
    %p89 = scmp.eq.s32.totalorder %s20, 1
    %p90 = por %p88, %p89
    %p92 = scmp.ne.s32.totalorder %s77, %s91
    %p93 = scmp.eq.s32.totalorder %s20, 0
    %p94 = por %p92, %p93
    %s96 = sadd.s32 %s95, 1
    %p99 = scmp.eq.s32.totalorder %s14, 1
    %p100 = scmp.ne.s32.totalorder %s95, %s97
    %p101 = scmp.eq.s32.totalorder %s14, 0
    %p102 = por %p100, %p101
    %p103 = scmp.ne.s32.totalorder %s95, %s97
    %p104 = scmp.eq.s32.totalorder %s19, 1
    %p105 = por %p103, %p104
    %p106 = scmp.ne.s32.totalorder %s97, %s98
    %p107 = scmp.eq.s32.totalorder %s19, 0
    %p108 = por %p106, %p107
    %p109 = scmp.ne.s32.totalorder %s97, %s98
    %p110 = scmp.eq.s32.totalorder %s20, 1
    %p111 = por %p109, %p110
    %p113 = scmp.ne.s32.totalorder %s98, %s112
    %p114 = scmp.eq.s32.totalorder %s20, 0
    %p115 = por %p113, %p114
    %s117 = sadd.s32 %s116, 1
    %p120 = scmp.eq.s32.totalorder %s14, 1
    %p121 = scmp.ne.s32.totalorder %s116, %s118
    %p122 = scmp.eq.s32.totalorder %s14, 0
    %p123 = por %p121, %p122
    %p124 = scmp.ne.s32.totalorder %s116, %s118
    %p125 = scmp.eq.s32.totalorder %s19, 1
    %p126 = por %p124, %p125
    %p127 = scmp.ne.s32.totalorder %s118, %s119
    %p128 = scmp.eq.s32.totalorder %s19, 0
    %p129 = por %p127, %p128
    %p130 = scmp.ne.s32.totalorder %s118, %s119
    %p131 = scmp.eq.s32.totalorder %s20, 1
    %p132 = por %p130, %p131
    %p134 = scmp.ne.s32.totalorder %s119, %s133
    %p135 = scmp.eq.s32.totalorder %s20, 0
    %p136 = por %p134, %p135
    %s138 = sadd.s32 %s137, 1
    %p141 = scmp.eq.s32.totalorder %s14, 1
    %p142 = scmp.ne.s32.totalorder %s137, %s139
    %p143 = scmp.eq.s32.totalorder %s14, 0
    %p144 = por %p142, %p143
    %p145 = scmp.ne.s32.totalorder %s137, %s139
    %p146 = scmp.eq.s32.totalorder %s19, 1
    %p147 = por %p145, %p146
    %p148 = scmp.ne.s32.totalorder %s139, %s140
    %p149 = scmp.eq.s32.totalorder %s19, 0
    %p150 = por %p148, %p149
    %p151 = scmp.ne.s32.totalorder %s139, %s140
    %p152 = scmp.eq.s32.totalorder %s20, 1
    %p153 = por %p151, %p152
    %p155 = scmp.ne.s32.totalorder %s140, %s154
    %p156 = scmp.eq.s32.totalorder %s20, 0
    %p157 = por %p155, %p156
    %s159 = sadd.s32 %s158, 1
    %p162 = scmp.eq.s32.totalorder %s14, 1
    %p163 = scmp.ne.s32.totalorder %s158, %s160
    %p164 = scmp.eq.s32.totalorder %s14, 0
    %p165 = por %p163, %p164
    %p166 = scmp.ne.s32.totalorder %s158, %s160
    %p167 = scmp.eq.s32.totalorder %s19, 1
    %p168 = por %p166, %p167
    %p169 = scmp.ne.s32.totalorder %s160, %s161
    %p170 = scmp.eq.s32.totalorder %s19, 0
    %p171 = por %p169, %p170
    %p172 = scmp.ne.s32.totalorder %s160, %s161
    %p173 = scmp.eq.s32.totalorder %s20, 1
    %p174 = por %p172, %p173
    %p176 = scmp.ne.s32.totalorder %s161, %s175
    %p177 = scmp.eq.s32.totalorder %s20, 0
    %p178 = por %p176, %p177
    %s179 = ssub.s32 %s14, %s21
    %p180 = scmp.eq.s32.totalorder %s179, 0
    %s182 = sadd.s32 %s181, 1
    %s183 = scalar_select %p180, %s181, %s182
    %p186 = pneg %p180
    %p187 = scmp.eq.s32.totalorder %s14, 1
    %p188 = por %p186, %p187
    %p189 = scmp.ne.s32.totalorder %s181, %s184
    %p190 = scmp.eq.s32.totalorder %s14, 0
    %p191 = por %p189, %p190
    %p192 = scmp.ne.s32.totalorder %s181, %s184
    %p193 = scmp.eq.s32.totalorder %s19, 1
    %p194 = por %p192, %p193
    %p195 = scmp.ne.s32.totalorder %s184, %s185
    %p196 = scmp.eq.s32.totalorder %s19, 0
    %p197 = por %p195, %p196
    %p198 = scmp.ne.s32.totalorder %s184, %s185
    %p199 = scmp.eq.s32.totalorder %s20, 1
    %p200 = por %p198, %p199
    %p202 = scmp.ne.s32.totalorder %s185, %s201
    %p203 = scmp.eq.s32.totalorder %s20, 0
    %p204 = por %p202, %p203
    %p205 = scmp.le.s32.totalorder 1, %s14
    %p206 = scmp.lt.s32.totalorder %s14, 3
    %p207 = pnand %p205, %p206
    %p208 = pneg %p207
    // Predicated region
    $region9: #{tpu_custom_call.1} parent=5 // pred_check
      _
    $region10: #{tpu_custom_call.1} parent=5 // pred_check_branch
      %210 = sbr.rel (%p207) target = $region12
    $region11: #{tpu_custom_call.1} parent=5 // pred_region
      %s211 = ssub.s32 %s14, 1
      // Predicated region
      $region13: #{tpu_custom_call.1} parent=11 // pred_check
        %p212 = pneg %p87
      $region14: #{tpu_custom_call.1} parent=11 // pred_check_branch
        %214 = sbr.rel (%p212) target = $region16
      $region15: #{tpu_custom_call.1} parent=11 // pred_region
        _
      $region16: #{tpu_custom_call.1} parent=11 // pred_fallthru
        _
      // Predicated region
      $region17: #{tpu_custom_call.1} parent=11 // pred_check
        %p215 = pneg %p108
      $region18: #{tpu_custom_call.1} parent=11 // pred_check_branch
        %217 = sbr.rel (%p215) target = $region20
      $region19: #{tpu_custom_call.1} parent=11 // pred_region
        _
      $region20: #{tpu_custom_call.1} parent=11 // pred_fallthru
        _
      // Predicated region
      $region21: #{tpu_custom_call.1} parent=11 // pred_check
        %p218 = pneg %p129
      $region22: #{tpu_custom_call.1} parent=11 // pred_check_branch
        %220 = sbr.rel (%p218) target = $region24
      $region23: #{tpu_custom_call.1} parent=11 // pred_region
        _
      $region24: #{tpu_custom_call.1} parent=11 // pred_fallthru
        _
      // Predicated region
      $region25: #{tpu_custom_call.1} parent=11 // pred_check
        %p221 = pneg %p150
      $region26: #{tpu_custom_call.1} parent=11 // pred_check_branch
        %223 = sbr.rel (%p221) target = $region28
      $region27: #{tpu_custom_call.1} parent=11 // pred_region
        _
      $region28: #{tpu_custom_call.1} parent=11 // pred_fallthru
        _
      // Predicated region
      $region29: #{tpu_custom_call.1} parent=11 // pred_check
        %p224 = pneg %p171
      $region30: #{tpu_custom_call.1} parent=11 // pred_check_branch
        %226 = sbr.rel (%p224) target = $region32
      $region31: #{tpu_custom_call.1} parent=11 // pred_region
        _
      $region32: #{tpu_custom_call.1} parent=11 // pred_fallthru
        _
    $region12: #{tpu_custom_call.1} parent=5 // pred_fallthru
      _
    %p227 = scmp.lt.s32.totalorder %s14, 2
    // Predicated region
    $region33: #{tpu_custom_call.1} parent=5 // pred_check
      %p228 = pneg %p227
    $region34: #{tpu_custom_call.1} parent=5 // pred_check_branch
      %230 = sbr.rel (%p228) target = $region36
    $region35: #{tpu_custom_call.1} parent=5 // pred_region
      // Predicated region
      $region37: #{tpu_custom_call.1} parent=35 // pred_check
        %p231 = pneg %p34
      $region38: #{tpu_custom_call.1} parent=35 // pred_check_branch
        %233 = sbr.rel (%p231) target = $region40
      $region39: #{tpu_custom_call.1} parent=35 // pred_region
        %s234 = smul.u32 128, %s14
        %p235 = scmp.lt.s32.totalorder %s234, 255
        %s236 = scalar_select %p235, %s234, 255
        %s237 = smul.addr %s236, 8
        %s238 = scalar_lea.vmem %s0, %s237
        %s239 = smul.u32 128, %s14
      $region40: #{tpu_custom_call.1} parent=35 // pred_fallthru
        _
      // Predicated region
      $region41: #{tpu_custom_call.1} parent=35 // pred_check
        %p240 = pneg %p60
      $region42: #{tpu_custom_call.1} parent=35 // pred_check_branch
        %242 = sbr.rel (%p240) target = $region44
      $region43: #{tpu_custom_call.1} parent=35 // pred_region
        %s243 = smul.u32 16, %s14
        %p244 = scmp.lt.s32.totalorder %s243, 31
        %s245 = scalar_select %p244, %s243, 31
        %s246 = smul.addr %s245, 8
        %s247 = scalar_lea.vmem %s1, %s246
        %s248 = smul.u32 16, %s14
      $region44: #{tpu_custom_call.1} parent=35 // pred_fallthru
        _
    $region36: #{tpu_custom_call.1} parent=5 // pred_fallthru
      _
    %p249 = scmp.le.s32.totalorder 1, %s14
    %p250 = scmp.lt.s32.totalorder %s14, 3
    %p251 = pnand %p249, %p250
    %p252 = pneg %p251
    // Predicated region
    $region45: #{tpu_custom_call.1} parent=5 // pred_check
      _
    $region46: #{tpu_custom_call.1} parent=5 // pred_check_branch
      %254 = sbr.rel (%p251) target = $region48
    $region47: #{tpu_custom_call.1} parent=5 // pred_region
      %s255 = ssub.s32 %s14, 1
      %s256 = smul.u32 128, %s19
      %p257 = scmp.lt.s32.totalorder %s256, 255
      %s258 = scalar_select %p257, %s256, 255
      %s259 = smul.addr %s258, 8
      %s260 = scalar_lea.vmem %s0, %s259
      %p261 = pneg %p40
      %p262 = pneg %p37
      %s263 = smul.u32 16, %s19
      %p264 = scmp.lt.s32.totalorder %s263, 31
      %s265 = scalar_select %p264, %s263, 31
      %s266 = smul.addr %s265, 8
      %s267 = scalar_lea.vmem %s1, %s266
      %p268 = pneg %p66
      %p269 = pneg %p63
      %p270 = pneg %p87
      %p271 = pneg %p84
      %p272 = pneg %p108
      %p273 = pneg %p105
      %p274 = pneg %p129
      %p275 = pneg %p126
      %p276 = pneg %p150
      %p277 = pneg %p147
      %p278 = pneg %p171
      %p279 = pneg %p168
      %p280 = pneg %p197
      %p281 = pneg %p194
      %s282 = smul.u32 16, %s19
      %p283 = scmp.lt.s32.totalorder %s282, 31
      %s284 = scalar_select %p283, %s282, 31
      %s285 = smul.addr %s284, 8
      %s286 = scalar_lea.vmem %s7, %s285
      %s287 = smul.u32 128, %s19
      %p288 = scmp.lt.s32.totalorder %s287, 255
      %s289 = scalar_select %p288, %s287, 255
      %s290 = smul.addr %s289, 8
      %s291 = scalar_lea.vmem %s0, %s290
      %s292 = smul.u32 128, %s19
      %s293 = smul.u32 16, %s19
      %p294 = scmp.lt.s32.totalorder %s293, 31
      %s295 = scalar_select %p294, %s293, 31
      %s296 = smul.addr %s295, 8
      %s297 = scalar_lea.vmem %s1, %s296
      %s298 = smul.u32 16, %s19
      %s299 = smul.u32 16, %s19
      %p300 = scmp.lt.s32.totalorder %s299, 31
      %s301 = scalar_select %p300, %s299, 31
      %s302 = smul.addr %s301, 8
      %s303 = scalar_lea.vmem %s7, %s302
      %s304 = smul.u32 16, %s19
      %v305 = vld [vmem:[%s291] sm:$0xff]
      %v306 = vld [vmem:[%s291 + $0x8] sm:$0xff]
      %v307 = vld [vmem:[%s291 + $0x10] sm:$0xff]
      %v308 = vld [vmem:[%s291 + $0x18] sm:$0xff]
      %v309 = vld [vmem:[%s291 + $0x20] sm:$0xff]
      %v310 = vld [vmem:[%s291 + $0x28] sm:$0xff]
      %v311 = vld [vmem:[%s291 + $0x30] sm:$0xff]
      %v312 = vld [vmem:[%s291 + $0x38] sm:$0xff]
      %v313 = vld [vmem:[%s291 + $0x40] sm:$0xff]
      %v314 = vld [vmem:[%s291 + $0x48] sm:$0xff]
      %v315 = vld [vmem:[%s291 + $0x50] sm:$0xff]
      %v316 = vld [vmem:[%s291 + $0x58] sm:$0xff]
      %v317 = vld [vmem:[%s291 + $0x60] sm:$0xff]
      %v318 = vld [vmem:[%s291 + $0x68] sm:$0xff]
      %v319 = vld [vmem:[%s291 + $0x70] sm:$0xff]
      %v320 = vld [vmem:[%s291 + $0x78] sm:$0xff]
      %v321 = vld [vmem:[%s291 + $0x80] sm:$0xff]
      %v322 = vld [vmem:[%s291 + $0x88] sm:$0xff]
      %v323 = vld [vmem:[%s291 + $0x90] sm:$0xff]
      %v324 = vld [vmem:[%s291 + $0x98] sm:$0xff]
      %v325 = vld [vmem:[%s291 + $0xa0] sm:$0xff]
      %v326 = vld [vmem:[%s291 + $0xa8] sm:$0xff]
      %v327 = vld [vmem:[%s291 + $0xb0] sm:$0xff]
      %v328 = vld [vmem:[%s291 + $0xb8] sm:$0xff]
      %v329 = vld [vmem:[%s291 + $0xc0] sm:$0xff]
      %v330 = vld [vmem:[%s291 + $0xc8] sm:$0xff]
      %v331 = vld [vmem:[%s291 + $0xd0] sm:$0xff]
      %v332 = vld [vmem:[%s291 + $0xd8] sm:$0xff]
      %v333 = vld [vmem:[%s291 + $0xe0] sm:$0xff]
      %v334 = vld [vmem:[%s291 + $0xe8] sm:$0xff]
      %v335 = vld [vmem:[%s291 + $0xf0] sm:$0xff]
      %v336 = vld [vmem:[%s291 + $0xf8] sm:$0xff]
      %v337 = vld [vmem:[%s291 + $0x100] sm:$0xff]
      %v338 = vld [vmem:[%s291 + $0x108] sm:$0xff]
      %v339 = vld [vmem:[%s291 + $0x110] sm:$0xff]
      %v340 = vld [vmem:[%s291 + $0x118] sm:$0xff]
      %v341 = vld [vmem:[%s291 + $0x120] sm:$0xff]
      %v342 = vld [vmem:[%s291 + $0x128] sm:$0xff]
      %v343 = vld [vmem:[%s291 + $0x130] sm:$0xff]
      %v344 = vld [vmem:[%s291 + $0x138] sm:$0xff]
      %v345 = vld [vmem:[%s291 + $0x140] sm:$0xff]
      %v346 = vld [vmem:[%s291 + $0x148] sm:$0xff]
      %v347 = vld [vmem:[%s291 + $0x150] sm:$0xff]
      %v348 = vld [vmem:[%s291 + $0x158] sm:$0xff]
      %v349 = vld [vmem:[%s291 + $0x160] sm:$0xff]
      %v350 = vld [vmem:[%s291 + $0x168] sm:$0xff]
      %v351 = vld [vmem:[%s291 + $0x170] sm:$0xff]
      %v352 = vld [vmem:[%s291 + $0x178] sm:$0xff]
      %v353 = vld [vmem:[%s291 + $0x180] sm:$0xff]
      %v354 = vld [vmem:[%s291 + $0x188] sm:$0xff]
      %v355 = vld [vmem:[%s291 + $0x190] sm:$0xff]
      %v356 = vld [vmem:[%s291 + $0x198] sm:$0xff]
      %v357 = vld [vmem:[%s291 + $0x1a0] sm:$0xff]
      %v358 = vld [vmem:[%s291 + $0x1a8] sm:$0xff]
      %v359 = vld [vmem:[%s291 + $0x1b0] sm:$0xff]
      %v360 = vld [vmem:[%s291 + $0x1b8] sm:$0xff]
      %v361 = vld [vmem:[%s291 + $0x1c0] sm:$0xff]
      %v362 = vld [vmem:[%s291 + $0x1c8] sm:$0xff]
      %v363 = vld [vmem:[%s291 + $0x1d0] sm:$0xff]
      %v364 = vld [vmem:[%s291 + $0x1d8] sm:$0xff]
      %v365 = vld [vmem:[%s291 + $0x1e0] sm:$0xff]
      %v366 = vld [vmem:[%s291 + $0x1e8] sm:$0xff]
      %v367 = vld [vmem:[%s291 + $0x1f0] sm:$0xff]
      %v368 = vld [vmem:[%s291 + $0x1f8] sm:$0xff]
      %v369 = vld [vmem:[%s291 + $0x200] sm:$0xff]
      %v370 = vld [vmem:[%s291 + $0x208] sm:$0xff]
      %v371 = vld [vmem:[%s291 + $0x210] sm:$0xff]
      %v372 = vld [vmem:[%s291 + $0x218] sm:$0xff]
      %v373 = vld [vmem:[%s291 + $0x220] sm:$0xff]
      %v374 = vld [vmem:[%s291 + $0x228] sm:$0xff]
      %v375 = vld [vmem:[%s291 + $0x230] sm:$0xff]
      %v376 = vld [vmem:[%s291 + $0x238] sm:$0xff]
      %v377 = vld [vmem:[%s291 + $0x240] sm:$0xff]
      %v378 = vld [vmem:[%s291 + $0x248] sm:$0xff]
      %v379 = vld [vmem:[%s291 + $0x250] sm:$0xff]
      %v380 = vld [vmem:[%s291 + $0x258] sm:$0xff]
      %v381 = vld [vmem:[%s291 + $0x260] sm:$0xff]
      %v382 = vld [vmem:[%s291 + $0x268] sm:$0xff]
      %v383 = vld [vmem:[%s291 + $0x270] sm:$0xff]
      %v384 = vld [vmem:[%s291 + $0x278] sm:$0xff]
      %v385 = vld [vmem:[%s291 + $0x280] sm:$0xff]
      %v386 = vld [vmem:[%s291 + $0x288] sm:$0xff]
      %v387 = vld [vmem:[%s291 + $0x290] sm:$0xff]
      %v388 = vld [vmem:[%s291 + $0x298] sm:$0xff]
      %v389 = vld [vmem:[%s291 + $0x2a0] sm:$0xff]
      %v390 = vld [vmem:[%s291 + $0x2a8] sm:$0xff]
      %v391 = vld [vmem:[%s291 + $0x2b0] sm:$0xff]
      %v392 = vld [vmem:[%s291 + $0x2b8] sm:$0xff]
      %v393 = vld [vmem:[%s291 + $0x2c0] sm:$0xff]
      %v394 = vld [vmem:[%s291 + $0x2c8] sm:$0xff]
      %v395 = vld [vmem:[%s291 + $0x2d0] sm:$0xff]
      %v396 = vld [vmem:[%s291 + $0x2d8] sm:$0xff]
      %v397 = vld [vmem:[%s291 + $0x2e0] sm:$0xff]
      %v398 = vld [vmem:[%s291 + $0x2e8] sm:$0xff]
      %v399 = vld [vmem:[%s291 + $0x2f0] sm:$0xff]
      %v400 = vld [vmem:[%s291 + $0x2f8] sm:$0xff]
      %v401 = vld [vmem:[%s291 + $0x300] sm:$0xff]
      %v402 = vld [vmem:[%s291 + $0x308] sm:$0xff]
      %v403 = vld [vmem:[%s291 + $0x310] sm:$0xff]
      %v404 = vld [vmem:[%s291 + $0x318] sm:$0xff]
      %v405 = vld [vmem:[%s291 + $0x320] sm:$0xff]
      %v406 = vld [vmem:[%s291 + $0x328] sm:$0xff]
      %v407 = vld [vmem:[%s291 + $0x330] sm:$0xff]
      %v408 = vld [vmem:[%s291 + $0x338] sm:$0xff]
      %v409 = vld [vmem:[%s291 + $0x340] sm:$0xff]
      %v410 = vld [vmem:[%s291 + $0x348] sm:$0xff]
      %v411 = vld [vmem:[%s291 + $0x350] sm:$0xff]
      %v412 = vld [vmem:[%s291 + $0x358] sm:$0xff]
      %v413 = vld [vmem:[%s291 + $0x360] sm:$0xff]
      %v414 = vld [vmem:[%s291 + $0x368] sm:$0xff]
      %v415 = vld [vmem:[%s291 + $0x370] sm:$0xff]
      %v416 = vld [vmem:[%s291 + $0x378] sm:$0xff]
      %v417 = vld [vmem:[%s291 + $0x380] sm:$0xff]
      %v418 = vld [vmem:[%s291 + $0x388] sm:$0xff]
      %v419 = vld [vmem:[%s291 + $0x390] sm:$0xff]
      %v420 = vld [vmem:[%s291 + $0x398] sm:$0xff]
      %v421 = vld [vmem:[%s291 + $0x3a0] sm:$0xff]
      %v422 = vld [vmem:[%s291 + $0x3a8] sm:$0xff]
      %v423 = vld [vmem:[%s291 + $0x3b0] sm:$0xff]
      %v424 = vld [vmem:[%s291 + $0x3b8] sm:$0xff]
      %v425 = vld [vmem:[%s291 + $0x3c0] sm:$0xff]
      %v426 = vld [vmem:[%s291 + $0x3c8] sm:$0xff]
      %v427 = vld [vmem:[%s291 + $0x3d0] sm:$0xff]
      %v428 = vld [vmem:[%s291 + $0x3d8] sm:$0xff]
      %v429 = vld [vmem:[%s291 + $0x3e0] sm:$0xff]
      %v430 = vld [vmem:[%s291 + $0x3e8] sm:$0xff]
      %v431 = vld [vmem:[%s291 + $0x3f0] sm:$0xff]
      %v432 = vld [vmem:[%s291 + $0x3f8] sm:$0xff]
      %v433 = vld [vmem:[%s2] sm:$0x1]
      %s434 = sld [smem:[#allocation2]]
      %v436 = vperm.slane %v433, 0
      %v438 = vmul.f32 %v305, %v436
      %v439 = vmul.f32 %v306, %v436
      %v440 = vmul.f32 %v307, %v436
      %v441 = vmul.f32 %v308, %v436
      %v442 = vmul.f32 %v309, %v436
      %v443 = vmul.f32 %v310, %v436
      %v444 = vmul.f32 %v311, %v436
      %v445 = vmul.f32 %v312, %v436
      %v446 = vmul.f32 %v313, %v436
      %v447 = vmul.f32 %v314, %v436
      %v448 = vmul.f32 %v315, %v436
      %v449 = vmul.f32 %v316, %v436
      %v450 = vmul.f32 %v317, %v436
      %v451 = vmul.f32 %v318, %v436
      %v452 = vmul.f32 %v319, %v436
      %v453 = vmul.f32 %v320, %v436
      %v454 = vmul.f32 %v321, %v436
      %v455 = vmul.f32 %v322, %v436
      %v456 = vmul.f32 %v323, %v436
      %v457 = vmul.f32 %v324, %v436
      %v458 = vmul.f32 %v325, %v436
      %v459 = vmul.f32 %v326, %v436
      %v460 = vmul.f32 %v327, %v436
      %v461 = vmul.f32 %v328, %v436
      %v462 = vmul.f32 %v329, %v436
      %v463 = vmul.f32 %v330, %v436
      %v464 = vmul.f32 %v331, %v436
      %v465 = vmul.f32 %v332, %v436
      %v466 = vmul.f32 %v333, %v436
      %v467 = vmul.f32 %v334, %v436
      %v468 = vmul.f32 %v335, %v436
      %v469 = vmul.f32 %v336, %v436
      %v470 = vmul.f32 %v337, %v436
      %v471 = vmul.f32 %v338, %v436
      %v472 = vmul.f32 %v339, %v436
      %v473 = vmul.f32 %v340, %v436
      %v474 = vmul.f32 %v341, %v436
      %v475 = vmul.f32 %v342, %v436
      %v476 = vmul.f32 %v343, %v436
      %v477 = vmul.f32 %v344, %v436
      %v478 = vmul.f32 %v345, %v436
      %v479 = vmul.f32 %v346, %v436
      %v480 = vmul.f32 %v347, %v436
      %v481 = vmul.f32 %v348, %v436
      %v482 = vmul.f32 %v349, %v436
      %v483 = vmul.f32 %v350, %v436
      %v484 = vmul.f32 %v351, %v436
      %v485 = vmul.f32 %v352, %v436
      %v486 = vmul.f32 %v353, %v436
      %v487 = vmul.f32 %v354, %v436
      %v488 = vmul.f32 %v355, %v436
      %v489 = vmul.f32 %v356, %v436
      %v490 = vmul.f32 %v357, %v436
      %v491 = vmul.f32 %v358, %v436
      %v492 = vmul.f32 %v359, %v436
      %v493 = vmul.f32 %v360, %v436
      %v494 = vmul.f32 %v361, %v436
      %v495 = vmul.f32 %v362, %v436
      %v496 = vmul.f32 %v363, %v436
      %v497 = vmul.f32 %v364, %v436
      %v498 = vmul.f32 %v365, %v436
      %v499 = vmul.f32 %v366, %v436
      %v500 = vmul.f32 %v367, %v436
      %v501 = vmul.f32 %v368, %v436
      %v502 = vmul.f32 %v369, %v436
      %v503 = vmul.f32 %v370, %v436
      %v504 = vmul.f32 %v371, %v436
      %v505 = vmul.f32 %v372, %v436
      %v506 = vmul.f32 %v373, %v436
      %v507 = vmul.f32 %v374, %v436
      %v508 = vmul.f32 %v375, %v436
      %v509 = vmul.f32 %v376, %v436
      %v510 = vmul.f32 %v377, %v436
      %v511 = vmul.f32 %v378, %v436
      %v512 = vmul.f32 %v379, %v436
      %v513 = vmul.f32 %v380, %v436
      %v514 = vmul.f32 %v381, %v436
      %v515 = vmul.f32 %v382, %v436
      %v516 = vmul.f32 %v383, %v436
      %v517 = vmul.f32 %v384, %v436
      %v518 = vmul.f32 %v385, %v436
      %v519 = vmul.f32 %v386, %v436
      %v520 = vmul.f32 %v387, %v436
      %v521 = vmul.f32 %v388, %v436
      %v522 = vmul.f32 %v389, %v436
      %v523 = vmul.f32 %v390, %v436
      %v524 = vmul.f32 %v391, %v436
      %v525 = vmul.f32 %v392, %v436
      %v526 = vmul.f32 %v393, %v436
      %v527 = vmul.f32 %v394, %v436
      %v528 = vmul.f32 %v395, %v436
      %v529 = vmul.f32 %v396, %v436
      %v530 = vmul.f32 %v397, %v436
      %v531 = vmul.f32 %v398, %v436
      %v532 = vmul.f32 %v399, %v436
      %v533 = vmul.f32 %v400, %v436
      %v534 = vmul.f32 %v401, %v436
      %v535 = vmul.f32 %v402, %v436
      %v536 = vmul.f32 %v403, %v436
      %v537 = vmul.f32 %v404, %v436
      %v538 = vmul.f32 %v405, %v436
      %v539 = vmul.f32 %v406, %v436
      %v540 = vmul.f32 %v407, %v436
      %v541 = vmul.f32 %v408, %v436
      %v542 = vmul.f32 %v409, %v436
      %v543 = vmul.f32 %v410, %v436
      %v544 = vmul.f32 %v411, %v436
      %v545 = vmul.f32 %v412, %v436
      %v546 = vmul.f32 %v413, %v436
      %v547 = vmul.f32 %v414, %v436
      %v548 = vmul.f32 %v415, %v436
      %v549 = vmul.f32 %v416, %v436
      %v550 = vmul.f32 %v417, %v436
      %v551 = vmul.f32 %v418, %v436
      %v552 = vmul.f32 %v419, %v436
      %v553 = vmul.f32 %v420, %v436
      %v554 = vmul.f32 %v421, %v436
      %v555 = vmul.f32 %v422, %v436
      %v556 = vmul.f32 %v423, %v436
      %v557 = vmul.f32 %v424, %v436
      %v558 = vmul.f32 %v425, %v436
      %v559 = vmul.f32 %v426, %v436
      %v560 = vmul.f32 %v427, %v436
      %v561 = vmul.f32 %v428, %v436
      %v562 = vmul.f32 %v429, %v436
      %v563 = vmul.f32 %v430, %v436
      %v564 = vmul.f32 %v431, %v436
      %v565 = vmul.f32 %v432, %v436
      %vm566 = vcmask 261120
      %v567 = vsel %vm566, %v438, 0.0
      %568 = vadd.xlane.f32.xlu0 %v567
      %v569 = vpop.xlane.xlu0 %568
      %v570 = vsel %vm566, %v439, 0.0
      %571 = vadd.xlane.f32.xlu0 %v570
      %v572 = vpop.xlane.xlu0 %571
      %v573 = vsel %vm566, %v440, 0.0
      %574 = vadd.xlane.f32.xlu0 %v573
      %v575 = vpop.xlane.xlu0 %574
      %v576 = vsel %vm566, %v441, 0.0
      %577 = vadd.xlane.f32.xlu0 %v576
      %v578 = vpop.xlane.xlu0 %577
      %v579 = vsel %vm566, %v442, 0.0
      %580 = vadd.xlane.f32.xlu0 %v579
      %v581 = vpop.xlane.xlu0 %580
      %v582 = vsel %vm566, %v443, 0.0
      %583 = vadd.xlane.f32.xlu0 %v582
      %v584 = vpop.xlane.xlu0 %583
      %v585 = vsel %vm566, %v444, 0.0
      %586 = vadd.xlane.f32.xlu0 %v585
      %v587 = vpop.xlane.xlu0 %586
      %v588 = vsel %vm566, %v445, 0.0
      %589 = vadd.xlane.f32.xlu0 %v588
      %v590 = vpop.xlane.xlu0 %589
      %v591 = vsel %vm566, %v446, 0.0
      %592 = vadd.xlane.f32.xlu0 %v591
      %v593 = vpop.xlane.xlu0 %592
      %v594 = vsel %vm566, %v447, 0.0
      %595 = vadd.xlane.f32.xlu0 %v594
      %v596 = vpop.xlane.xlu0 %595
      %v597 = vsel %vm566, %v448, 0.0
      %598 = vadd.xlane.f32.xlu0 %v597
      %v599 = vpop.xlane.xlu0 %598
      %v600 = vsel %vm566, %v449, 0.0
      %601 = vadd.xlane.f32.xlu0 %v600
      %v602 = vpop.xlane.xlu0 %601
      %v603 = vsel %vm566, %v450, 0.0
      %604 = vadd.xlane.f32.xlu0 %v603
      %v605 = vpop.xlane.xlu0 %604
      %v606 = vsel %vm566, %v451, 0.0
      %607 = vadd.xlane.f32.xlu0 %v606
      %v608 = vpop.xlane.xlu0 %607
      %v609 = vsel %vm566, %v452, 0.0
      %610 = vadd.xlane.f32.xlu0 %v609
      %v611 = vpop.xlane.xlu0 %610
      %v612 = vsel %vm566, %v453, 0.0
      %613 = vadd.xlane.f32.xlu0 %v612
      %v614 = vpop.xlane.xlu0 %613
      %v615 = vsel %vm566, %v454, 0.0
      %616 = vadd.xlane.f32.xlu0 %v615
      %v617 = vpop.xlane.xlu0 %616
      %v618 = vsel %vm566, %v455, 0.0
      %619 = vadd.xlane.f32.xlu0 %v618
      %v620 = vpop.xlane.xlu0 %619
      %v621 = vsel %vm566, %v456, 0.0
      %622 = vadd.xlane.f32.xlu0 %v621
      %v623 = vpop.xlane.xlu0 %622
      %v624 = vsel %vm566, %v457, 0.0
      %625 = vadd.xlane.f32.xlu0 %v624
      %v626 = vpop.xlane.xlu0 %625
      %v627 = vsel %vm566, %v458, 0.0
      %628 = vadd.xlane.f32.xlu0 %v627
      %v629 = vpop.xlane.xlu0 %628
      %v630 = vsel %vm566, %v459, 0.0
      %631 = vadd.xlane.f32.xlu0 %v630
      %v632 = vpop.xlane.xlu0 %631
      %v633 = vsel %vm566, %v460, 0.0
      %634 = vadd.xlane.f32.xlu0 %v633
      %v635 = vpop.xlane.xlu0 %634
      %v636 = vsel %vm566, %v461, 0.0
      %637 = vadd.xlane.f32.xlu0 %v636
      %v638 = vpop.xlane.xlu0 %637
      %v639 = vsel %vm566, %v462, 0.0
      %640 = vadd.xlane.f32.xlu0 %v639
      %v641 = vpop.xlane.xlu0 %640
      %v642 = vsel %vm566, %v463, 0.0
      %643 = vadd.xlane.f32.xlu0 %v642
      %v644 = vpop.xlane.xlu0 %643
      %v645 = vsel %vm566, %v464, 0.0
      %646 = vadd.xlane.f32.xlu0 %v645
      %v647 = vpop.xlane.xlu0 %646
      %v648 = vsel %vm566, %v465, 0.0
      %649 = vadd.xlane.f32.xlu0 %v648
      %v650 = vpop.xlane.xlu0 %649
      %v651 = vsel %vm566, %v466, 0.0
      %652 = vadd.xlane.f32.xlu0 %v651
      %v653 = vpop.xlane.xlu0 %652
      %v654 = vsel %vm566, %v467, 0.0
      %655 = vadd.xlane.f32.xlu0 %v654
      %v656 = vpop.xlane.xlu0 %655
      %v657 = vsel %vm566, %v468, 0.0
      %658 = vadd.xlane.f32.xlu0 %v657
      %v659 = vpop.xlane.xlu0 %658
      %v660 = vsel %vm566, %v469, 0.0
      %661 = vadd.xlane.f32.xlu0 %v660
      %v662 = vpop.xlane.xlu0 %661
      %v663 = vsel %vm566, %v470, 0.0
      %664 = vadd.xlane.f32.xlu0 %v663
      %v665 = vpop.xlane.xlu0 %664
      %v666 = vsel %vm566, %v471, 0.0
      %667 = vadd.xlane.f32.xlu0 %v666
      %v668 = vpop.xlane.xlu0 %667
      %v669 = vsel %vm566, %v472, 0.0
      %670 = vadd.xlane.f32.xlu0 %v669
      %v671 = vpop.xlane.xlu0 %670
      %v672 = vsel %vm566, %v473, 0.0
      %673 = vadd.xlane.f32.xlu0 %v672
      %v674 = vpop.xlane.xlu0 %673
      %v675 = vsel %vm566, %v474, 0.0
      %676 = vadd.xlane.f32.xlu0 %v675
      %v677 = vpop.xlane.xlu0 %676
      %v678 = vsel %vm566, %v475, 0.0
      %679 = vadd.xlane.f32.xlu0 %v678
      %v680 = vpop.xlane.xlu0 %679
      %v681 = vsel %vm566, %v476, 0.0
      %682 = vadd.xlane.f32.xlu0 %v681
      %v683 = vpop.xlane.xlu0 %682
      %v684 = vsel %vm566, %v477, 0.0
      %685 = vadd.xlane.f32.xlu0 %v684
      %v686 = vpop.xlane.xlu0 %685
      %v687 = vsel %vm566, %v478, 0.0
      %688 = vadd.xlane.f32.xlu0 %v687
      %v689 = vpop.xlane.xlu0 %688
      %v690 = vsel %vm566, %v479, 0.0
      %691 = vadd.xlane.f32.xlu0 %v690
      %v692 = vpop.xlane.xlu0 %691
      %v693 = vsel %vm566, %v480, 0.0
      %694 = vadd.xlane.f32.xlu0 %v693
      %v695 = vpop.xlane.xlu0 %694
      %v696 = vsel %vm566, %v481, 0.0
      %697 = vadd.xlane.f32.xlu0 %v696
      %v698 = vpop.xlane.xlu0 %697
      %v699 = vsel %vm566, %v482, 0.0
      %700 = vadd.xlane.f32.xlu0 %v699
      %v701 = vpop.xlane.xlu0 %700
      %v702 = vsel %vm566, %v483, 0.0
      %703 = vadd.xlane.f32.xlu0 %v702
      %v704 = vpop.xlane.xlu0 %703
      %v705 = vsel %vm566, %v484, 0.0
      %706 = vadd.xlane.f32.xlu0 %v705
      %v707 = vpop.xlane.xlu0 %706
      %v708 = vsel %vm566, %v485, 0.0
      %709 = vadd.xlane.f32.xlu0 %v708
      %v710 = vpop.xlane.xlu0 %709
      %v711 = vsel %vm566, %v486, 0.0
      %712 = vadd.xlane.f32.xlu0 %v711
      %v713 = vpop.xlane.xlu0 %712
      %v714 = vsel %vm566, %v487, 0.0
      %715 = vadd.xlane.f32.xlu0 %v714
      %v716 = vpop.xlane.xlu0 %715
      %v717 = vsel %vm566, %v488, 0.0
      %718 = vadd.xlane.f32.xlu0 %v717
      %v719 = vpop.xlane.xlu0 %718
      %v720 = vsel %vm566, %v489, 0.0
      %721 = vadd.xlane.f32.xlu0 %v720
      %v722 = vpop.xlane.xlu0 %721
      %v723 = vsel %vm566, %v490, 0.0
      %724 = vadd.xlane.f32.xlu0 %v723
      %v725 = vpop.xlane.xlu0 %724
      %v726 = vsel %vm566, %v491, 0.0
      %727 = vadd.xlane.f32.xlu0 %v726
      %v728 = vpop.xlane.xlu0 %727
      %v729 = vsel %vm566, %v492, 0.0
      %730 = vadd.xlane.f32.xlu0 %v729
      %v731 = vpop.xlane.xlu0 %730
      %v732 = vsel %vm566, %v493, 0.0
      %733 = vadd.xlane.f32.xlu0 %v732
      %v734 = vpop.xlane.xlu0 %733
      %v735 = vsel %vm566, %v494, 0.0
      %736 = vadd.xlane.f32.xlu0 %v735
      %v737 = vpop.xlane.xlu0 %736
      %v738 = vsel %vm566, %v495, 0.0
      %739 = vadd.xlane.f32.xlu0 %v738
      %v740 = vpop.xlane.xlu0 %739
      %v741 = vsel %vm566, %v496, 0.0
      %742 = vadd.xlane.f32.xlu0 %v741
      %v743 = vpop.xlane.xlu0 %742
      %v744 = vsel %vm566, %v497, 0.0
      %745 = vadd.xlane.f32.xlu0 %v744
      %v746 = vpop.xlane.xlu0 %745
      %v747 = vsel %vm566, %v498, 0.0
      %748 = vadd.xlane.f32.xlu0 %v747
      %v749 = vpop.xlane.xlu0 %748
      %v750 = vsel %vm566, %v499, 0.0
      %751 = vadd.xlane.f32.xlu0 %v750
      %v752 = vpop.xlane.xlu0 %751
      %v753 = vsel %vm566, %v500, 0.0
      %754 = vadd.xlane.f32.xlu0 %v753
      %v755 = vpop.xlane.xlu0 %754
      %v756 = vsel %vm566, %v501, 0.0
      %757 = vadd.xlane.f32.xlu0 %v756
      %v758 = vpop.xlane.xlu0 %757
      %v759 = vsel %vm566, %v502, 0.0
      %760 = vadd.xlane.f32.xlu0 %v759
      %v761 = vpop.xlane.xlu0 %760
      %v762 = vsel %vm566, %v503, 0.0
      %763 = vadd.xlane.f32.xlu0 %v762
      %v764 = vpop.xlane.xlu0 %763
      %v765 = vsel %vm566, %v504, 0.0
      %766 = vadd.xlane.f32.xlu0 %v765
      %v767 = vpop.xlane.xlu0 %766
      %v768 = vsel %vm566, %v505, 0.0
      %769 = vadd.xlane.f32.xlu0 %v768
      %v770 = vpop.xlane.xlu0 %769
      %v771 = vsel %vm566, %v506, 0.0
      %772 = vadd.xlane.f32.xlu0 %v771
      %v773 = vpop.xlane.xlu0 %772
      %v774 = vsel %vm566, %v507, 0.0
      %775 = vadd.xlane.f32.xlu0 %v774
      %v776 = vpop.xlane.xlu0 %775
      %v777 = vsel %vm566, %v508, 0.0
      %778 = vadd.xlane.f32.xlu0 %v777
      %v779 = vpop.xlane.xlu0 %778
      %v780 = vsel %vm566, %v509, 0.0
      %781 = vadd.xlane.f32.xlu0 %v780
      %v782 = vpop.xlane.xlu0 %781
      %v783 = vsel %vm566, %v510, 0.0
      %784 = vadd.xlane.f32.xlu0 %v783
      %v785 = vpop.xlane.xlu0 %784
      %v786 = vsel %vm566, %v511, 0.0
      %787 = vadd.xlane.f32.xlu0 %v786
      %v788 = vpop.xlane.xlu0 %787
      %v789 = vsel %vm566, %v512, 0.0
      %790 = vadd.xlane.f32.xlu0 %v789
      %v791 = vpop.xlane.xlu0 %790
      %v792 = vsel %vm566, %v513, 0.0
      %793 = vadd.xlane.f32.xlu0 %v792
      %v794 = vpop.xlane.xlu0 %793
      %v795 = vsel %vm566, %v514, 0.0
      %796 = vadd.xlane.f32.xlu0 %v795
      %v797 = vpop.xlane.xlu0 %796
      %v798 = vsel %vm566, %v515, 0.0
      %799 = vadd.xlane.f32.xlu0 %v798
      %v800 = vpop.xlane.xlu0 %799
      %v801 = vsel %vm566, %v516, 0.0
      %802 = vadd.xlane.f32.xlu0 %v801
      %v803 = vpop.xlane.xlu0 %802
      %v804 = vsel %vm566, %v517, 0.0
      %805 = vadd.xlane.f32.xlu0 %v804
      %v806 = vpop.xlane.xlu0 %805
      %v807 = vsel %vm566, %v518, 0.0
      %808 = vadd.xlane.f32.xlu0 %v807
      %v809 = vpop.xlane.xlu0 %808
      %v810 = vsel %vm566, %v519, 0.0
      %811 = vadd.xlane.f32.xlu0 %v810
      %v812 = vpop.xlane.xlu0 %811
      %v813 = vsel %vm566, %v520, 0.0
      %814 = vadd.xlane.f32.xlu0 %v813
      %v815 = vpop.xlane.xlu0 %814
      %v816 = vsel %vm566, %v521, 0.0
      %817 = vadd.xlane.f32.xlu0 %v816
      %v818 = vpop.xlane.xlu0 %817
      %v819 = vsel %vm566, %v522, 0.0
      %820 = vadd.xlane.f32.xlu0 %v819
      %v821 = vpop.xlane.xlu0 %820
      %v822 = vsel %vm566, %v523, 0.0
      %823 = vadd.xlane.f32.xlu0 %v822
      %v824 = vpop.xlane.xlu0 %823
      %v825 = vsel %vm566, %v524, 0.0
      %826 = vadd.xlane.f32.xlu0 %v825
      %v827 = vpop.xlane.xlu0 %826
      %v828 = vsel %vm566, %v525, 0.0
      %829 = vadd.xlane.f32.xlu0 %v828
      %v830 = vpop.xlane.xlu0 %829
      %v831 = vsel %vm566, %v526, 0.0
      %832 = vadd.xlane.f32.xlu0 %v831
      %v833 = vpop.xlane.xlu0 %832
      %v834 = vsel %vm566, %v527, 0.0
      %835 = vadd.xlane.f32.xlu0 %v834
      %v836 = vpop.xlane.xlu0 %835
      %v837 = vsel %vm566, %v528, 0.0
      %838 = vadd.xlane.f32.xlu0 %v837
      %v839 = vpop.xlane.xlu0 %838
      %v840 = vsel %vm566, %v529, 0.0
      %841 = vadd.xlane.f32.xlu0 %v840
      %v842 = vpop.xlane.xlu0 %841
      %v843 = vsel %vm566, %v530, 0.0
      %844 = vadd.xlane.f32.xlu0 %v843
      %v845 = vpop.xlane.xlu0 %844
      %v846 = vsel %vm566, %v531, 0.0
      %847 = vadd.xlane.f32.xlu0 %v846
      %v848 = vpop.xlane.xlu0 %847
      %v849 = vsel %vm566, %v532, 0.0
      %850 = vadd.xlane.f32.xlu0 %v849
      %v851 = vpop.xlane.xlu0 %850
      %v852 = vsel %vm566, %v533, 0.0
      %853 = vadd.xlane.f32.xlu0 %v852
      %v854 = vpop.xlane.xlu0 %853
      %v855 = vsel %vm566, %v534, 0.0
      %856 = vadd.xlane.f32.xlu0 %v855
      %v857 = vpop.xlane.xlu0 %856
      %v858 = vsel %vm566, %v535, 0.0
      %859 = vadd.xlane.f32.xlu0 %v858
      %v860 = vpop.xlane.xlu0 %859
      %v861 = vsel %vm566, %v536, 0.0
      %862 = vadd.xlane.f32.xlu0 %v861
      %v863 = vpop.xlane.xlu0 %862
      %v864 = vsel %vm566, %v537, 0.0
      %865 = vadd.xlane.f32.xlu0 %v864
      %v866 = vpop.xlane.xlu0 %865
      %v867 = vsel %vm566, %v538, 0.0
      %868 = vadd.xlane.f32.xlu0 %v867
      %v869 = vpop.xlane.xlu0 %868
      %v870 = vsel %vm566, %v539, 0.0
      %871 = vadd.xlane.f32.xlu0 %v870
      %v872 = vpop.xlane.xlu0 %871
      %v873 = vsel %vm566, %v540, 0.0
      %874 = vadd.xlane.f32.xlu0 %v873
      %v875 = vpop.xlane.xlu0 %874
      %v876 = vsel %vm566, %v541, 0.0
      %877 = vadd.xlane.f32.xlu0 %v876
      %v878 = vpop.xlane.xlu0 %877
      %v879 = vsel %vm566, %v542, 0.0
      %880 = vadd.xlane.f32.xlu0 %v879
      %v881 = vpop.xlane.xlu0 %880
      %v882 = vsel %vm566, %v543, 0.0
      %883 = vadd.xlane.f32.xlu0 %v882
      %v884 = vpop.xlane.xlu0 %883
      %v885 = vsel %vm566, %v544, 0.0
      %886 = vadd.xlane.f32.xlu0 %v885
      %v887 = vpop.xlane.xlu0 %886
      %v888 = vsel %vm566, %v545, 0.0
      %889 = vadd.xlane.f32.xlu0 %v888
      %v890 = vpop.xlane.xlu0 %889
      %v891 = vsel %vm566, %v546, 0.0
      %892 = vadd.xlane.f32.xlu0 %v891
      %v893 = vpop.xlane.xlu0 %892
      %v894 = vsel %vm566, %v547, 0.0
      %895 = vadd.xlane.f32.xlu0 %v894
      %v896 = vpop.xlane.xlu0 %895
      %v897 = vsel %vm566, %v548, 0.0
      %898 = vadd.xlane.f32.xlu0 %v897
      %v899 = vpop.xlane.xlu0 %898
      %v900 = vsel %vm566, %v549, 0.0
      %901 = vadd.xlane.f32.xlu0 %v900
      %v902 = vpop.xlane.xlu0 %901
      %v903 = vsel %vm566, %v550, 0.0
      %904 = vadd.xlane.f32.xlu0 %v903
      %v905 = vpop.xlane.xlu0 %904
      %v906 = vsel %vm566, %v551, 0.0
      %907 = vadd.xlane.f32.xlu0 %v906
      %v908 = vpop.xlane.xlu0 %907
      %v909 = vsel %vm566, %v552, 0.0
      %910 = vadd.xlane.f32.xlu0 %v909
      %v911 = vpop.xlane.xlu0 %910
      %v912 = vsel %vm566, %v553, 0.0
      %913 = vadd.xlane.f32.xlu0 %v912
      %v914 = vpop.xlane.xlu0 %913
      %v915 = vsel %vm566, %v554, 0.0
      %916 = vadd.xlane.f32.xlu0 %v915
      %v917 = vpop.xlane.xlu0 %916
      %v918 = vsel %vm566, %v555, 0.0
      %919 = vadd.xlane.f32.xlu0 %v918
      %v920 = vpop.xlane.xlu0 %919
      %v921 = vsel %vm566, %v556, 0.0
      %922 = vadd.xlane.f32.xlu0 %v921
      %v923 = vpop.xlane.xlu0 %922
      %v924 = vsel %vm566, %v557, 0.0
      %925 = vadd.xlane.f32.xlu0 %v924
      %v926 = vpop.xlane.xlu0 %925
      %v927 = vsel %vm566, %v558, 0.0
      %928 = vadd.xlane.f32.xlu0 %v927
      %v929 = vpop.xlane.xlu0 %928
      %v930 = vsel %vm566, %v559, 0.0
      %931 = vadd.xlane.f32.xlu0 %v930
      %v932 = vpop.xlane.xlu0 %931
      %v933 = vsel %vm566, %v560, 0.0
      %934 = vadd.xlane.f32.xlu0 %v933
      %v935 = vpop.xlane.xlu0 %934
      %v936 = vsel %vm566, %v561, 0.0
      %937 = vadd.xlane.f32.xlu0 %v936
      %v938 = vpop.xlane.xlu0 %937
      %v939 = vsel %vm566, %v562, 0.0
      %940 = vadd.xlane.f32.xlu0 %v939
      %v941 = vpop.xlane.xlu0 %940
      %v942 = vsel %vm566, %v563, 0.0
      %943 = vadd.xlane.f32.xlu0 %v942
      %v944 = vpop.xlane.xlu0 %943
      %v945 = vsel %vm566, %v564, 0.0
      %946 = vadd.xlane.f32.xlu0 %v945
      %v947 = vpop.xlane.xlu0 %946
      %v948 = vsel %vm566, %v565, 0.0
      %949 = vadd.xlane.f32.xlu0 %v948
      %v950 = vpop.xlane.xlu0 %949
      %v951 = vstv %s434
      %v952 = vadd.f32 %v569, %v951
      %v953 = vadd.f32 %v572, %v951
      %v954 = vadd.f32 %v575, %v951
      %v955 = vadd.f32 %v578, %v951
      %v956 = vadd.f32 %v581, %v951
      %v957 = vadd.f32 %v584, %v951
      %v958 = vadd.f32 %v587, %v951
      %v959 = vadd.f32 %v590, %v951
      %v960 = vadd.f32 %v593, %v951
      %v961 = vadd.f32 %v596, %v951
      %v962 = vadd.f32 %v599, %v951
      %v963 = vadd.f32 %v602, %v951
      %v964 = vadd.f32 %v605, %v951
      %v965 = vadd.f32 %v608, %v951
      %v966 = vadd.f32 %v611, %v951
      %v967 = vadd.f32 %v614, %v951
      %v968 = vadd.f32 %v617, %v951
      %v969 = vadd.f32 %v620, %v951
      %v970 = vadd.f32 %v623, %v951
      %v971 = vadd.f32 %v626, %v951
      %v972 = vadd.f32 %v629, %v951
      %v973 = vadd.f32 %v632, %v951
      %v974 = vadd.f32 %v635, %v951
      %v975 = vadd.f32 %v638, %v951
      %v976 = vadd.f32 %v641, %v951
      %v977 = vadd.f32 %v644, %v951
      %v978 = vadd.f32 %v647, %v951
      %v979 = vadd.f32 %v650, %v951
      %v980 = vadd.f32 %v653, %v951
      %v981 = vadd.f32 %v656, %v951
      %v982 = vadd.f32 %v659, %v951
      %v983 = vadd.f32 %v662, %v951
      %v984 = vadd.f32 %v665, %v951
      %v985 = vadd.f32 %v668, %v951
      %v986 = vadd.f32 %v671, %v951
      %v987 = vadd.f32 %v674, %v951
      %v988 = vadd.f32 %v677, %v951
      %v989 = vadd.f32 %v680, %v951
      %v990 = vadd.f32 %v683, %v951
      %v991 = vadd.f32 %v686, %v951
      %v992 = vadd.f32 %v689, %v951
      %v993 = vadd.f32 %v692, %v951
      %v994 = vadd.f32 %v695, %v951
      %v995 = vadd.f32 %v698, %v951
      %v996 = vadd.f32 %v701, %v951
      %v997 = vadd.f32 %v704, %v951
      %v998 = vadd.f32 %v707, %v951
      %v999 = vadd.f32 %v710, %v951
      %v1000 = vadd.f32 %v713, %v951
      %v1001 = vadd.f32 %v716, %v951
      %v1002 = vadd.f32 %v719, %v951
      %v1003 = vadd.f32 %v722, %v951
      %v1004 = vadd.f32 %v725, %v951
      %v1005 = vadd.f32 %v728, %v951
      %v1006 = vadd.f32 %v731, %v951
      %v1007 = vadd.f32 %v734, %v951
      %v1008 = vadd.f32 %v737, %v951
      %v1009 = vadd.f32 %v740, %v951
      %v1010 = vadd.f32 %v743, %v951
      %v1011 = vadd.f32 %v746, %v951
      %v1012 = vadd.f32 %v749, %v951
      %v1013 = vadd.f32 %v752, %v951
      %v1014 = vadd.f32 %v755, %v951
      %v1015 = vadd.f32 %v758, %v951
      %v1016 = vadd.f32 %v761, %v951
      %v1017 = vadd.f32 %v764, %v951
      %v1018 = vadd.f32 %v767, %v951
      %v1019 = vadd.f32 %v770, %v951
      %v1020 = vadd.f32 %v773, %v951
      %v1021 = vadd.f32 %v776, %v951
      %v1022 = vadd.f32 %v779, %v951
      %v1023 = vadd.f32 %v782, %v951
      %v1024 = vadd.f32 %v785, %v951
      %v1025 = vadd.f32 %v788, %v951
      %v1026 = vadd.f32 %v791, %v951
      %v1027 = vadd.f32 %v794, %v951
      %v1028 = vadd.f32 %v797, %v951
      %v1029 = vadd.f32 %v800, %v951
      %v1030 = vadd.f32 %v803, %v951
      %v1031 = vadd.f32 %v806, %v951
      %v1032 = vadd.f32 %v809, %v951
      %v1033 = vadd.f32 %v812, %v951
      %v1034 = vadd.f32 %v815, %v951
      %v1035 = vadd.f32 %v818, %v951
      %v1036 = vadd.f32 %v821, %v951
      %v1037 = vadd.f32 %v824, %v951
      %v1038 = vadd.f32 %v827, %v951
      %v1039 = vadd.f32 %v830, %v951
      %v1040 = vadd.f32 %v833, %v951
      %v1041 = vadd.f32 %v836, %v951
      %v1042 = vadd.f32 %v839, %v951
      %v1043 = vadd.f32 %v842, %v951
      %v1044 = vadd.f32 %v845, %v951
      %v1045 = vadd.f32 %v848, %v951
      %v1046 = vadd.f32 %v851, %v951
      %v1047 = vadd.f32 %v854, %v951
      %v1048 = vadd.f32 %v857, %v951
      %v1049 = vadd.f32 %v860, %v951
      %v1050 = vadd.f32 %v863, %v951
      %v1051 = vadd.f32 %v866, %v951
      %v1052 = vadd.f32 %v869, %v951
      %v1053 = vadd.f32 %v872, %v951
      %v1054 = vadd.f32 %v875, %v951
      %v1055 = vadd.f32 %v878, %v951
      %v1056 = vadd.f32 %v881, %v951
      %v1057 = vadd.f32 %v884, %v951
      %v1058 = vadd.f32 %v887, %v951
      %v1059 = vadd.f32 %v890, %v951
      %v1060 = vadd.f32 %v893, %v951
      %v1061 = vadd.f32 %v896, %v951
      %v1062 = vadd.f32 %v899, %v951
      %v1063 = vadd.f32 %v902, %v951
      %v1064 = vadd.f32 %v905, %v951
      %v1065 = vadd.f32 %v908, %v951
      %v1066 = vadd.f32 %v911, %v951
      %v1067 = vadd.f32 %v914, %v951
      %v1068 = vadd.f32 %v917, %v951
      %v1069 = vadd.f32 %v920, %v951
      %v1070 = vadd.f32 %v923, %v951
      %v1071 = vadd.f32 %v926, %v951
      %v1072 = vadd.f32 %v929, %v951
      %v1073 = vadd.f32 %v932, %v951
      %v1074 = vadd.f32 %v935, %v951
      %v1075 = vadd.f32 %v938, %v951
      %v1076 = vadd.f32 %v941, %v951
      %v1077 = vadd.f32 %v944, %v951
      %v1078 = vadd.f32 %v947, %v951
      %v1079 = vadd.f32 %v950, %v951
      %v1080 = vmax.f32 %v952, 0.0
      %v1081 = vmax.f32 %v953, 0.0
      %v1082 = vmax.f32 %v954, 0.0
      %v1083 = vmax.f32 %v955, 0.0
      %v1084 = vmax.f32 %v956, 0.0
      %v1085 = vmax.f32 %v957, 0.0
      %v1086 = vmax.f32 %v958, 0.0
      %v1087 = vmax.f32 %v959, 0.0
      %v1088 = vmax.f32 %v960, 0.0
      %v1089 = vmax.f32 %v961, 0.0
      %v1090 = vmax.f32 %v962, 0.0
      %v1091 = vmax.f32 %v963, 0.0
      %v1092 = vmax.f32 %v964, 0.0
      %v1093 = vmax.f32 %v965, 0.0
      %v1094 = vmax.f32 %v966, 0.0
      %v1095 = vmax.f32 %v967, 0.0
      %v1096 = vmax.f32 %v968, 0.0
      %v1097 = vmax.f32 %v969, 0.0
      %v1098 = vmax.f32 %v970, 0.0
      %v1099 = vmax.f32 %v971, 0.0
      %v1100 = vmax.f32 %v972, 0.0
      %v1101 = vmax.f32 %v973, 0.0
      %v1102 = vmax.f32 %v974, 0.0
      %v1103 = vmax.f32 %v975, 0.0
      %v1104 = vmax.f32 %v976, 0.0
      %v1105 = vmax.f32 %v977, 0.0
      %v1106 = vmax.f32 %v978, 0.0
      %v1107 = vmax.f32 %v979, 0.0
      %v1108 = vmax.f32 %v980, 0.0
      %v1109 = vmax.f32 %v981, 0.0
      %v1110 = vmax.f32 %v982, 0.0
      %v1111 = vmax.f32 %v983, 0.0
      %v1112 = vmax.f32 %v984, 0.0
      %v1113 = vmax.f32 %v985, 0.0
      %v1114 = vmax.f32 %v986, 0.0
      %v1115 = vmax.f32 %v987, 0.0
      %v1116 = vmax.f32 %v988, 0.0
      %v1117 = vmax.f32 %v989, 0.0
      %v1118 = vmax.f32 %v990, 0.0
      %v1119 = vmax.f32 %v991, 0.0
      %v1120 = vmax.f32 %v992, 0.0
      %v1121 = vmax.f32 %v993, 0.0
      %v1122 = vmax.f32 %v994, 0.0
      %v1123 = vmax.f32 %v995, 0.0
      %v1124 = vmax.f32 %v996, 0.0
      %v1125 = vmax.f32 %v997, 0.0
      %v1126 = vmax.f32 %v998, 0.0
      %v1127 = vmax.f32 %v999, 0.0
      %v1128 = vmax.f32 %v1000, 0.0
      %v1129 = vmax.f32 %v1001, 0.0
      %v1130 = vmax.f32 %v1002, 0.0
      %v1131 = vmax.f32 %v1003, 0.0
      %v1132 = vmax.f32 %v1004, 0.0
      %v1133 = vmax.f32 %v1005, 0.0
      %v1134 = vmax.f32 %v1006, 0.0
      %v1135 = vmax.f32 %v1007, 0.0
      %v1136 = vmax.f32 %v1008, 0.0
      %v1137 = vmax.f32 %v1009, 0.0
      %v1138 = vmax.f32 %v1010, 0.0
      %v1139 = vmax.f32 %v1011, 0.0
      %v1140 = vmax.f32 %v1012, 0.0
      %v1141 = vmax.f32 %v1013, 0.0
      %v1142 = vmax.f32 %v1014, 0.0
      %v1143 = vmax.f32 %v1015, 0.0
      %v1144 = vmax.f32 %v1016, 0.0
      %v1145 = vmax.f32 %v1017, 0.0
      %v1146 = vmax.f32 %v1018, 0.0
      %v1147 = vmax.f32 %v1019, 0.0
      %v1148 = vmax.f32 %v1020, 0.0
      %v1149 = vmax.f32 %v1021, 0.0
      %v1150 = vmax.f32 %v1022, 0.0
      %v1151 = vmax.f32 %v1023, 0.0
      %v1152 = vmax.f32 %v1024, 0.0
      %v1153 = vmax.f32 %v1025, 0.0
      %v1154 = vmax.f32 %v1026, 0.0
      %v1155 = vmax.f32 %v1027, 0.0
      %v1156 = vmax.f32 %v1028, 0.0
      %v1157 = vmax.f32 %v1029, 0.0
      %v1158 = vmax.f32 %v1030, 0.0
      %v1159 = vmax.f32 %v1031, 0.0
      %v1160 = vmax.f32 %v1032, 0.0
      %v1161 = vmax.f32 %v1033, 0.0
      %v1162 = vmax.f32 %v1034, 0.0
      %v1163 = vmax.f32 %v1035, 0.0
      %v1164 = vmax.f32 %v1036, 0.0
      %v1165 = vmax.f32 %v1037, 0.0
      %v1166 = vmax.f32 %v1038, 0.0
      %v1167 = vmax.f32 %v1039, 0.0
      %v1168 = vmax.f32 %v1040, 0.0
      %v1169 = vmax.f32 %v1041, 0.0
      %v1170 = vmax.f32 %v1042, 0.0
      %v1171 = vmax.f32 %v1043, 0.0
      %v1172 = vmax.f32 %v1044, 0.0
      %v1173 = vmax.f32 %v1045, 0.0
      %v1174 = vmax.f32 %v1046, 0.0
      %v1175 = vmax.f32 %v1047, 0.0
      %v1176 = vmax.f32 %v1048, 0.0
      %v1177 = vmax.f32 %v1049, 0.0
      %v1178 = vmax.f32 %v1050, 0.0
      %v1179 = vmax.f32 %v1051, 0.0
      %v1180 = vmax.f32 %v1052, 0.0
      %v1181 = vmax.f32 %v1053, 0.0
      %v1182 = vmax.f32 %v1054, 0.0
      %v1183 = vmax.f32 %v1055, 0.0
      %v1184 = vmax.f32 %v1056, 0.0
      %v1185 = vmax.f32 %v1057, 0.0
      %v1186 = vmax.f32 %v1058, 0.0
      %v1187 = vmax.f32 %v1059, 0.0
      %v1188 = vmax.f32 %v1060, 0.0
      %v1189 = vmax.f32 %v1061, 0.0
      %v1190 = vmax.f32 %v1062, 0.0
      %v1191 = vmax.f32 %v1063, 0.0
      %v1192 = vmax.f32 %v1064, 0.0
      %v1193 = vmax.f32 %v1065, 0.0
      %v1194 = vmax.f32 %v1066, 0.0
      %v1195 = vmax.f32 %v1067, 0.0
      %v1196 = vmax.f32 %v1068, 0.0
      %v1197 = vmax.f32 %v1069, 0.0
      %v1198 = vmax.f32 %v1070, 0.0
      %v1199 = vmax.f32 %v1071, 0.0
      %v1200 = vmax.f32 %v1072, 0.0
      %v1201 = vmax.f32 %v1073, 0.0
      %v1202 = vmax.f32 %v1074, 0.0
      %v1203 = vmax.f32 %v1075, 0.0
      %v1204 = vmax.f32 %v1076, 0.0
      %v1205 = vmax.f32 %v1077, 0.0
      %v1206 = vmax.f32 %v1078, 0.0
      %v1207 = vmax.f32 %v1079, 0.0
      %v1208 = vld [vmem:[%s4] sm:$0xff]
      %v1209 = vld [vmem:[%s297] sm:$0xff]
      %v1210 = vld [vmem:[%s297 + $0x8] sm:$0xff]
      %v1211 = vld [vmem:[%s297 + $0x10] sm:$0xff]
      %v1212 = vld [vmem:[%s297 + $0x18] sm:$0xff]
      %v1213 = vld [vmem:[%s297 + $0x20] sm:$0xff]
      %v1214 = vld [vmem:[%s297 + $0x28] sm:$0xff]
      %v1215 = vld [vmem:[%s297 + $0x30] sm:$0xff]
      %v1216 = vld [vmem:[%s297 + $0x38] sm:$0xff]
      %v1217 = vld [vmem:[%s297 + $0x40] sm:$0xff]
      %v1218 = vld [vmem:[%s297 + $0x48] sm:$0xff]
      %v1219 = vld [vmem:[%s297 + $0x50] sm:$0xff]
      %v1220 = vld [vmem:[%s297 + $0x58] sm:$0xff]
      %v1221 = vld [vmem:[%s297 + $0x60] sm:$0xff]
      %v1222 = vld [vmem:[%s297 + $0x68] sm:$0xff]
      %v1223 = vld [vmem:[%s297 + $0x70] sm:$0xff]
      %v1224 = vld [vmem:[%s297 + $0x78] sm:$0xff]
      %v1225 = vld [vmem:[%s5] sm:$0x1]
      %1227 = vset.pattern.permute.xlu0 0
      %1228 = vperm.xlu0 %1227, %v1209
      %v1229 = vpop.permute.xlu0 %1228
      %1232 = vset.pattern.permute.xlu0 0
      %1233 = vperm.xlu0 %1232, %v1210
      %v1234 = vpop.permute.xlu0 %1233
      %1237 = vset.pattern.permute.xlu0 0
      %1238 = vperm.xlu0 %1237, %v1211
      %v1239 = vpop.permute.xlu0 %1238
      %1242 = vset.pattern.permute.xlu0 0
      %1243 = vperm.xlu0 %1242, %v1212
      %v1244 = vpop.permute.xlu0 %1243
      %1247 = vset.pattern.permute.xlu0 0
      %1248 = vperm.xlu0 %1247, %v1213
      %v1249 = vpop.permute.xlu0 %1248
      %1252 = vset.pattern.permute.xlu0 0
      %1253 = vperm.xlu0 %1252, %v1214
      %v1254 = vpop.permute.xlu0 %1253
      %1257 = vset.pattern.permute.xlu0 0
      %1258 = vperm.xlu0 %1257, %v1215
      %v1259 = vpop.permute.xlu0 %1258
      %1262 = vset.pattern.permute.xlu0 0
      %1263 = vperm.xlu0 %1262, %v1216
      %v1264 = vpop.permute.xlu0 %1263
      %1267 = vset.pattern.permute.xlu0 0
      %1268 = vperm.xlu0 %1267, %v1217
      %v1269 = vpop.permute.xlu0 %1268
      %1272 = vset.pattern.permute.xlu0 0
      %1273 = vperm.xlu0 %1272, %v1218
      %v1274 = vpop.permute.xlu0 %1273
      %1277 = vset.pattern.permute.xlu0 0
      %1278 = vperm.xlu0 %1277, %v1219
      %v1279 = vpop.permute.xlu0 %1278
      %1282 = vset.pattern.permute.xlu0 0
      %1283 = vperm.xlu0 %1282, %v1220
      %v1284 = vpop.permute.xlu0 %1283
      %1287 = vset.pattern.permute.xlu0 0
      %1288 = vperm.xlu0 %1287, %v1221
      %v1289 = vpop.permute.xlu0 %1288
      %1292 = vset.pattern.permute.xlu0 0
      %1293 = vperm.xlu0 %1292, %v1222
      %v1294 = vpop.permute.xlu0 %1293
      %1297 = vset.pattern.permute.xlu0 0
      %1298 = vperm.xlu0 %1297, %v1223
      %v1299 = vpop.permute.xlu0 %1298
      %1302 = vset.pattern.permute.xlu0 0
      %1303 = vperm.xlu0 %1302, %v1224
      %v1304 = vpop.permute.xlu0 %1303
      %v1307 = vperm.slane %v1225, 0
      %v1309 = vmul.f32 %v1229, %v1307
      %v1310 = vmul.f32 %v1234, %v1307
      %v1311 = vmul.f32 %v1239, %v1307
      %v1312 = vmul.f32 %v1244, %v1307
      %v1313 = vmul.f32 %v1249, %v1307
      %v1314 = vmul.f32 %v1254, %v1307
      %v1315 = vmul.f32 %v1259, %v1307
      %v1316 = vmul.f32 %v1264, %v1307
      %v1317 = vmul.f32 %v1269, %v1307
      %v1318 = vmul.f32 %v1274, %v1307
      %v1319 = vmul.f32 %v1279, %v1307
      %v1320 = vmul.f32 %v1284, %v1307
      %v1321 = vmul.f32 %v1289, %v1307
      %v1322 = vmul.f32 %v1294, %v1307
      %v1323 = vmul.f32 %v1299, %v1307
      %v1324 = vmul.f32 %v1304, %v1307
      %v1453 = vlaneseq
      %v1454 = vand.u32 %v1453, 127
      %v1455 = vperm.slane %v1080, %v1454
      %v1456 = vperm.slane %v1081, %v1454
      %v1457 = vperm.slane %v1082, %v1454
      %v1458 = vperm.slane %v1083, %v1454
      %v1459 = vperm.slane %v1084, %v1454
      %v1460 = vperm.slane %v1085, %v1454
      %v1461 = vperm.slane %v1086, %v1454
      %v1462 = vperm.slane %v1087, %v1454
      %v1463 = vperm.slane %v1088, %v1454
      %v1464 = vperm.slane %v1089, %v1454
      %v1465 = vperm.slane %v1090, %v1454
      %v1466 = vperm.slane %v1091, %v1454
      %v1467 = vperm.slane %v1092, %v1454
      %v1468 = vperm.slane %v1093, %v1454
      %v1469 = vperm.slane %v1094, %v1454
      %v1470 = vperm.slane %v1095, %v1454
      %v1471 = vperm.slane %v1096, %v1454
      %v1472 = vperm.slane %v1097, %v1454
      %v1473 = vperm.slane %v1098, %v1454
      %v1474 = vperm.slane %v1099, %v1454
      %v1475 = vperm.slane %v1100, %v1454
      %v1476 = vperm.slane %v1101, %v1454
      %v1477 = vperm.slane %v1102, %v1454
      %v1478 = vperm.slane %v1103, %v1454
      %v1479 = vperm.slane %v1104, %v1454
      %v1480 = vperm.slane %v1105, %v1454
      %v1481 = vperm.slane %v1106, %v1454
      %v1482 = vperm.slane %v1107, %v1454
      %v1483 = vperm.slane %v1108, %v1454
      %v1484 = vperm.slane %v1109, %v1454
      %v1485 = vperm.slane %v1110, %v1454
      %v1486 = vperm.slane %v1111, %v1454
      %v1487 = vperm.slane %v1112, %v1454
      %v1488 = vperm.slane %v1113, %v1454
      %v1489 = vperm.slane %v1114, %v1454
      %v1490 = vperm.slane %v1115, %v1454
      %v1491 = vperm.slane %v1116, %v1454
      %v1492 = vperm.slane %v1117, %v1454
      %v1493 = vperm.slane %v1118, %v1454
      %v1494 = vperm.slane %v1119, %v1454
      %v1495 = vperm.slane %v1120, %v1454
      %v1496 = vperm.slane %v1121, %v1454
      %v1497 = vperm.slane %v1122, %v1454
      %v1498 = vperm.slane %v1123, %v1454
      %v1499 = vperm.slane %v1124, %v1454
      %v1500 = vperm.slane %v1125, %v1454
      %v1501 = vperm.slane %v1126, %v1454
      %v1502 = vperm.slane %v1127, %v1454
      %v1503 = vperm.slane %v1128, %v1454
      %v1504 = vperm.slane %v1129, %v1454
      %v1505 = vperm.slane %v1130, %v1454
      %v1506 = vperm.slane %v1131, %v1454
      %v1507 = vperm.slane %v1132, %v1454
      %v1508 = vperm.slane %v1133, %v1454
      %v1509 = vperm.slane %v1134, %v1454
      %v1510 = vperm.slane %v1135, %v1454
      %v1511 = vperm.slane %v1136, %v1454
      %v1512 = vperm.slane %v1137, %v1454
      %v1513 = vperm.slane %v1138, %v1454
      %v1514 = vperm.slane %v1139, %v1454
      %v1515 = vperm.slane %v1140, %v1454
      %v1516 = vperm.slane %v1141, %v1454
      %v1517 = vperm.slane %v1142, %v1454
      %v1518 = vperm.slane %v1143, %v1454
      %v1519 = vperm.slane %v1144, %v1454
      %v1520 = vperm.slane %v1145, %v1454
      %v1521 = vperm.slane %v1146, %v1454
      %v1522 = vperm.slane %v1147, %v1454
      %v1523 = vperm.slane %v1148, %v1454
      %v1524 = vperm.slane %v1149, %v1454
      %v1525 = vperm.slane %v1150, %v1454
      %v1526 = vperm.slane %v1151, %v1454
      %v1527 = vperm.slane %v1152, %v1454
      %v1528 = vperm.slane %v1153, %v1454
      %v1529 = vperm.slane %v1154, %v1454
      %v1530 = vperm.slane %v1155, %v1454
      %v1531 = vperm.slane %v1156, %v1454
      %v1532 = vperm.slane %v1157, %v1454
      %v1533 = vperm.slane %v1158, %v1454
      %v1534 = vperm.slane %v1159, %v1454
      %v1535 = vperm.slane %v1160, %v1454
      %v1536 = vperm.slane %v1161, %v1454
      %v1537 = vperm.slane %v1162, %v1454
      %v1538 = vperm.slane %v1163, %v1454
      %v1539 = vperm.slane %v1164, %v1454
      %v1540 = vperm.slane %v1165, %v1454
      %v1541 = vperm.slane %v1166, %v1454
      %v1542 = vperm.slane %v1167, %v1454
      %v1543 = vperm.slane %v1168, %v1454
      %v1544 = vperm.slane %v1169, %v1454
      %v1545 = vperm.slane %v1170, %v1454
      %v1546 = vperm.slane %v1171, %v1454
      %v1547 = vperm.slane %v1172, %v1454
      %v1548 = vperm.slane %v1173, %v1454
      %v1549 = vperm.slane %v1174, %v1454
      %v1550 = vperm.slane %v1175, %v1454
      %v1551 = vperm.slane %v1176, %v1454
      %v1552 = vperm.slane %v1177, %v1454
      %v1553 = vperm.slane %v1178, %v1454
      %v1554 = vperm.slane %v1179, %v1454
      %v1555 = vperm.slane %v1180, %v1454
      %v1556 = vperm.slane %v1181, %v1454
      %v1557 = vperm.slane %v1182, %v1454
      %v1558 = vperm.slane %v1183, %v1454
      %v1559 = vperm.slane %v1184, %v1454
      %v1560 = vperm.slane %v1185, %v1454
      %v1561 = vperm.slane %v1186, %v1454
      %v1562 = vperm.slane %v1187, %v1454
      %v1563 = vperm.slane %v1188, %v1454
      %v1564 = vperm.slane %v1189, %v1454
      %v1565 = vperm.slane %v1190, %v1454
      %v1566 = vperm.slane %v1191, %v1454
      %v1567 = vperm.slane %v1192, %v1454
      %v1568 = vperm.slane %v1193, %v1454
      %v1569 = vperm.slane %v1194, %v1454
      %v1570 = vperm.slane %v1195, %v1454
      %v1571 = vperm.slane %v1196, %v1454
      %v1572 = vperm.slane %v1197, %v1454
      %v1573 = vperm.slane %v1198, %v1454
      %v1574 = vperm.slane %v1199, %v1454
      %v1575 = vperm.slane %v1200, %v1454
      %v1576 = vperm.slane %v1201, %v1454
      %v1577 = vperm.slane %v1202, %v1454
      %v1578 = vperm.slane %v1203, %v1454
      %v1579 = vperm.slane %v1204, %v1454
      %v1580 = vperm.slane %v1205, %v1454
      %v1581 = vperm.slane %v1206, %v1454
      %v1582 = vperm.slane %v1207, %v1454
      %vm1583 = vcmask 1041409
      %v1584 = vsel %vm1583, %v1456, %v1455
      %vm1585 = vcmask 1042434
      %v1586 = vsel %vm1585, %v1457, %v1584
      %vm1587 = vcmask 1043459
      %v1588 = vsel %vm1587, %v1458, %v1586
      %vm1589 = vcmask 1044484
      %v1590 = vsel %vm1589, %v1459, %v1588
      %vm1591 = vcmask 1045509
      %v1592 = vsel %vm1591, %v1460, %v1590
      %vm1593 = vcmask 1046534
      %v1594 = vsel %vm1593, %v1461, %v1592
      %vm1595 = vcmask 1047559
      %v1596 = vsel %vm1595, %v1462, %v1594
      %v1597 = vsel %vm1583, %v1464, %v1463
      %v1598 = vsel %vm1585, %v1465, %v1597
      %v1599 = vsel %vm1587, %v1466, %v1598
      %v1600 = vsel %vm1589, %v1467, %v1599
      %v1601 = vsel %vm1591, %v1468, %v1600
      %v1602 = vsel %vm1593, %v1469, %v1601
      %v1603 = vsel %vm1595, %v1470, %v1602
      %v1604 = vsel %vm1583, %v1472, %v1471
      %v1605 = vsel %vm1585, %v1473, %v1604
      %v1606 = vsel %vm1587, %v1474, %v1605
      %v1607 = vsel %vm1589, %v1475, %v1606
      %v1608 = vsel %vm1591, %v1476, %v1607
      %v1609 = vsel %vm1593, %v1477, %v1608
      %v1610 = vsel %vm1595, %v1478, %v1609
      %v1611 = vsel %vm1583, %v1480, %v1479
      %v1612 = vsel %vm1585, %v1481, %v1611
      %v1613 = vsel %vm1587, %v1482, %v1612
      %v1614 = vsel %vm1589, %v1483, %v1613
      %v1615 = vsel %vm1591, %v1484, %v1614
      %v1616 = vsel %vm1593, %v1485, %v1615
      %v1617 = vsel %vm1595, %v1486, %v1616
      %v1618 = vsel %vm1583, %v1488, %v1487
      %v1619 = vsel %vm1585, %v1489, %v1618
      %v1620 = vsel %vm1587, %v1490, %v1619
      %v1621 = vsel %vm1589, %v1491, %v1620
      %v1622 = vsel %vm1591, %v1492, %v1621
      %v1623 = vsel %vm1593, %v1493, %v1622
      %v1624 = vsel %vm1595, %v1494, %v1623
      %v1625 = vsel %vm1583, %v1496, %v1495
      %v1626 = vsel %vm1585, %v1497, %v1625
      %v1627 = vsel %vm1587, %v1498, %v1626
      %v1628 = vsel %vm1589, %v1499, %v1627
      %v1629 = vsel %vm1591, %v1500, %v1628
      %v1630 = vsel %vm1593, %v1501, %v1629
      %v1631 = vsel %vm1595, %v1502, %v1630
      %v1632 = vsel %vm1583, %v1504, %v1503
      %v1633 = vsel %vm1585, %v1505, %v1632
      %v1634 = vsel %vm1587, %v1506, %v1633
      %v1635 = vsel %vm1589, %v1507, %v1634
      %v1636 = vsel %vm1591, %v1508, %v1635
      %v1637 = vsel %vm1593, %v1509, %v1636
      %v1638 = vsel %vm1595, %v1510, %v1637
      %v1639 = vsel %vm1583, %v1512, %v1511
      %v1640 = vsel %vm1585, %v1513, %v1639
      %v1641 = vsel %vm1587, %v1514, %v1640
      %v1642 = vsel %vm1589, %v1515, %v1641
      %v1643 = vsel %vm1591, %v1516, %v1642
      %v1644 = vsel %vm1593, %v1517, %v1643
      %v1645 = vsel %vm1595, %v1518, %v1644
      %v1646 = vsel %vm1583, %v1520, %v1519
      %v1647 = vsel %vm1585, %v1521, %v1646
      %v1648 = vsel %vm1587, %v1522, %v1647
      %v1649 = vsel %vm1589, %v1523, %v1648
      %v1650 = vsel %vm1591, %v1524, %v1649
      %v1651 = vsel %vm1593, %v1525, %v1650
      %v1652 = vsel %vm1595, %v1526, %v1651
      %v1653 = vsel %vm1583, %v1528, %v1527
      %v1654 = vsel %vm1585, %v1529, %v1653
      %v1655 = vsel %vm1587, %v1530, %v1654
      %v1656 = vsel %vm1589, %v1531, %v1655
      %v1657 = vsel %vm1591, %v1532, %v1656
      %v1658 = vsel %vm1593, %v1533, %v1657
      %v1659 = vsel %vm1595, %v1534, %v1658
      %v1660 = vsel %vm1583, %v1536, %v1535
      %v1661 = vsel %vm1585, %v1537, %v1660
      %v1662 = vsel %vm1587, %v1538, %v1661
      %v1663 = vsel %vm1589, %v1539, %v1662
      %v1664 = vsel %vm1591, %v1540, %v1663
      %v1665 = vsel %vm1593, %v1541, %v1664
      %v1666 = vsel %vm1595, %v1542, %v1665
      %v1667 = vsel %vm1583, %v1544, %v1543
      %v1668 = vsel %vm1585, %v1545, %v1667
      %v1669 = vsel %vm1587, %v1546, %v1668
      %v1670 = vsel %vm1589, %v1547, %v1669
      %v1671 = vsel %vm1591, %v1548, %v1670
      %v1672 = vsel %vm1593, %v1549, %v1671
      %v1673 = vsel %vm1595, %v1550, %v1672
      %v1674 = vsel %vm1583, %v1552, %v1551
      %v1675 = vsel %vm1585, %v1553, %v1674
      %v1676 = vsel %vm1587, %v1554, %v1675
      %v1677 = vsel %vm1589, %v1555, %v1676
      %v1678 = vsel %vm1591, %v1556, %v1677
      %v1679 = vsel %vm1593, %v1557, %v1678
      %v1680 = vsel %vm1595, %v1558, %v1679
      %v1681 = vsel %vm1583, %v1560, %v1559
      %v1682 = vsel %vm1585, %v1561, %v1681
      %v1683 = vsel %vm1587, %v1562, %v1682
      %v1684 = vsel %vm1589, %v1563, %v1683
      %v1685 = vsel %vm1591, %v1564, %v1684
      %v1686 = vsel %vm1593, %v1565, %v1685
      %v1687 = vsel %vm1595, %v1566, %v1686
      %v1688 = vsel %vm1583, %v1568, %v1567
      %v1689 = vsel %vm1585, %v1569, %v1688
      %v1690 = vsel %vm1587, %v1570, %v1689
      %v1691 = vsel %vm1589, %v1571, %v1690
      %v1692 = vsel %vm1591, %v1572, %v1691
      %v1693 = vsel %vm1593, %v1573, %v1692
      %v1694 = vsel %vm1595, %v1574, %v1693
      %v1695 = vsel %vm1583, %v1576, %v1575
      %v1696 = vsel %vm1585, %v1577, %v1695
      %v1697 = vsel %vm1587, %v1578, %v1696
      %v1698 = vsel %vm1589, %v1579, %v1697
      %v1699 = vsel %vm1591, %v1580, %v1698
      %v1700 = vsel %vm1593, %v1581, %v1699
      %v1701 = vsel %vm1595, %v1582, %v1700
      %vm1702 = vcmask 64512
      %v1703 = vsel %vm1702, %v1596, 0
      %v1705 = vsel %vm1702, %v1603, 0
      %v1707 = vsel %vm1702, %v1610, 0
      %v1709 = vsel %vm1702, %v1617, 0
      %v1711 = vsel %vm1702, %v1624, 0
      %v1713 = vsel %vm1702, %v1631, 0
      %v1715 = vsel %vm1702, %v1638, 0
      %v1717 = vsel %vm1702, %v1645, 0
      %v1719 = vsel %vm1702, %v1652, 0
      %v1721 = vsel %vm1702, %v1659, 0
      %v1723 = vsel %vm1702, %v1666, 0
      %v1725 = vsel %vm1702, %v1673, 0
      %v1727 = vsel %vm1702, %v1680, 0
      %v1729 = vsel %vm1702, %v1687, 0
      %v1731 = vsel %vm1702, %v1694, 0
      %v1733 = vsel %vm1702, %v1701, 0
      %1735 = vmatpush.msra.mxu0 0.0
      %1736 = vmatpush.msra.mxu0 0.0
      %1737 = vmatpush.msra.mxu0 0.0
      %1738 = vmatpush.msra.mxu0 0.0
      %1739 = vmatpush.msra.mxu0 0.0
      %1740 = vmatpush.msra.mxu0 0.0
      %1741 = vmatpush.msra.mxu0 0.0
      %1742 = vmatpush.msra.mxu0 0.0
      %1743 = vmatpush.msra.mxu0 0.0
      %1744 = vmatpush.msra.mxu0 0.0
      %1745 = vmatpush.msra.mxu0 0.0
      %1746 = vmatpush.msra.mxu0 0.0
      %1747 = vmatpush.msra.mxu0 0.0
      %1748 = vmatpush.msra.mxu0 0.0
      %1749 = vmatpush.msra.mxu0 0.0
      %1750 = vmatpush.msra.mxu0 %v1208
      %1751 = vmatmul.f32.gmra.mxu0 %v1703
      %v1752 = vpop.f32.mrf.mxu0
      %v1753 = vadd.f32 %v1309, %v1752
      %1754 = vmatmul.f32.gmra.mxu0 %v1705
      %v1755 = vpop.f32.mrf.mxu0
      %v1756 = vadd.f32 %v1310, %v1755
      %1757 = vmatmul.f32.gmra.mxu0 %v1707
      %v1758 = vpop.f32.mrf.mxu0
      %v1759 = vadd.f32 %v1311, %v1758
      %1760 = vmatmul.f32.gmra.mxu0 %v1709
      %v1761 = vpop.f32.mrf.mxu0
      %v1762 = vadd.f32 %v1312, %v1761
      %1763 = vmatmul.f32.gmra.mxu0 %v1711
      %v1764 = vpop.f32.mrf.mxu0
      %v1765 = vadd.f32 %v1313, %v1764
      %1766 = vmatmul.f32.gmra.mxu0 %v1713
      %v1767 = vpop.f32.mrf.mxu0
      %v1768 = vadd.f32 %v1314, %v1767
      %1769 = vmatmul.f32.gmra.mxu0 %v1715
      %v1770 = vpop.f32.mrf.mxu0
      %v1771 = vadd.f32 %v1315, %v1770
      %1772 = vmatmul.f32.gmra.mxu0 %v1717
      %v1773 = vpop.f32.mrf.mxu0
      %v1774 = vadd.f32 %v1316, %v1773
      %1775 = vmatmul.f32.gmra.mxu0 %v1719
      %v1776 = vpop.f32.mrf.mxu0
      %v1777 = vadd.f32 %v1317, %v1776
      %1778 = vmatmul.f32.gmra.mxu0 %v1721
      %v1779 = vpop.f32.mrf.mxu0
      %v1780 = vadd.f32 %v1318, %v1779
      %1781 = vmatmul.f32.gmra.mxu0 %v1723
      %v1782 = vpop.f32.mrf.mxu0
      %v1783 = vadd.f32 %v1319, %v1782
      %1784 = vmatmul.f32.gmra.mxu0 %v1725
      %v1785 = vpop.f32.mrf.mxu0
      %v1786 = vadd.f32 %v1320, %v1785
      %1787 = vmatmul.f32.gmra.mxu0 %v1727
      %v1788 = vpop.f32.mrf.mxu0
      %v1789 = vadd.f32 %v1321, %v1788
      %1790 = vmatmul.f32.gmra.mxu0 %v1729
      %v1791 = vpop.f32.mrf.mxu0
      %v1792 = vadd.f32 %v1322, %v1791
      %1793 = vmatmul.f32.gmra.mxu0 %v1731
      %v1794 = vpop.f32.mrf.mxu0
      %v1795 = vadd.f32 %v1323, %v1794
      %1796 = vmatmul.f32.gmra.mxu0 %v1733
      %v1797 = vpop.f32.mrf.mxu0
      %v1798 = vadd.f32 %v1324, %v1797
      %1799 = vdwg.mxu0
      %v1800 = vld [vmem:[%s6] sm:$0x1]
      %v1802 = vperm.slane %v1800, 0
      %v1804 = vadd.f32 %v1753, %v1802
      %v1805 = vadd.f32 %v1756, %v1802
      %v1806 = vadd.f32 %v1759, %v1802
      %v1807 = vadd.f32 %v1762, %v1802
      %v1808 = vadd.f32 %v1765, %v1802
      %v1809 = vadd.f32 %v1768, %v1802
      %v1810 = vadd.f32 %v1771, %v1802
      %v1811 = vadd.f32 %v1774, %v1802
      %v1812 = vadd.f32 %v1777, %v1802
      %v1813 = vadd.f32 %v1780, %v1802
      %v1814 = vadd.f32 %v1783, %v1802
      %v1815 = vadd.f32 %v1786, %v1802
      %v1816 = vadd.f32 %v1789, %v1802
      %v1817 = vadd.f32 %v1792, %v1802
      %v1818 = vadd.f32 %v1795, %v1802
      %v1819 = vadd.f32 %v1798, %v1802
      %vm1820 = vcmask 23552
      %1821 = vst.msk [vmem:[%s303] sm:$0xff] %vm1820, %v1804
      %1822 = vst.msk [vmem:[%s303 + $0x8] sm:$0xff] %vm1820, %v1805
      %1823 = vst.msk [vmem:[%s303 + $0x10] sm:$0xff] %vm1820, %v1806
      %1824 = vst.msk [vmem:[%s303 + $0x18] sm:$0xff] %vm1820, %v1807
      %1825 = vst.msk [vmem:[%s303 + $0x20] sm:$0xff] %vm1820, %v1808
      %1826 = vst.msk [vmem:[%s303 + $0x28] sm:$0xff] %vm1820, %v1809
      %1827 = vst.msk [vmem:[%s303 + $0x30] sm:$0xff] %vm1820, %v1810
      %1828 = vst.msk [vmem:[%s303 + $0x38] sm:$0xff] %vm1820, %v1811
      %1829 = vst.msk [vmem:[%s303 + $0x40] sm:$0xff] %vm1820, %v1812
      %1830 = vst.msk [vmem:[%s303 + $0x48] sm:$0xff] %vm1820, %v1813
      %1831 = vst.msk [vmem:[%s303 + $0x50] sm:$0xff] %vm1820, %v1814
      %1832 = vst.msk [vmem:[%s303 + $0x58] sm:$0xff] %vm1820, %v1815
      %1833 = vst.msk [vmem:[%s303 + $0x60] sm:$0xff] %vm1820, %v1816
      %1834 = vst.msk [vmem:[%s303 + $0x68] sm:$0xff] %vm1820, %v1817
      %1835 = vst.msk [vmem:[%s303 + $0x70] sm:$0xff] %vm1820, %v1818
      %1836 = vst.msk [vmem:[%s303 + $0x78] sm:$0xff] %vm1820, %v1819
      %s1837 = smul.u32 16, %s19
      %p1838 = scmp.lt.s32.totalorder %s1837, 31
      %s1839 = scalar_select %p1838, %s1837, 31
      %s1840 = smul.addr %s1839, 8
      %s1841 = scalar_lea.vmem %s7, %s1840
      // Predicated region
      $region49: #{tpu_custom_call.1} parent=47 // pred_check
        %p1842 = pneg %p194
      $region50: #{tpu_custom_call.1} parent=47 // pred_check_branch
        %1844 = sbr.rel (%p1842) target = $region52
      $region51: #{tpu_custom_call.1} parent=47 // pred_region
        %s1845 = smul.u32 16, %s19
      $region52: #{tpu_custom_call.1} parent=47 // pred_fallthru
        _
    $region48: #{tpu_custom_call.1} parent=5 // pred_fallthru
      _
    %p1846 = scmp.le.s32.totalorder 2, %s14
    // Predicated region
    $region53: #{tpu_custom_call.1} parent=5 // pred_check
      %p1847 = pneg %p1846
    $region54: #{tpu_custom_call.1} parent=5 // pred_check_branch
      %1849 = sbr.rel (%p1847) target = $region56
    $region55: #{tpu_custom_call.1} parent=5 // pred_region
      %s1850 = ssub.s32 %s14, 2
      // Predicated region
      $region57: #{tpu_custom_call.1} parent=55 // pred_check
        %p1851 = pneg %p200
      $region58: #{tpu_custom_call.1} parent=55 // pred_check_branch
        %1853 = sbr.rel (%p1851) target = $region60
      $region59: #{tpu_custom_call.1} parent=55 // pred_region
        %s1854 = smul.u32 16, %s20
        %p1855 = scmp.lt.s32.totalorder %s1854, 31
        %s1856 = scalar_select %p1855, %s1854, 31
        %s1857 = smul.addr %s1856, 8
        %s1858 = scalar_lea.vmem %s7, %s1857
      $region60: #{tpu_custom_call.1} parent=55 // pred_fallthru
        _
    $region56: #{tpu_custom_call.1} parent=5 // pred_fallthru
      _
  $region6: #{tpu_custom_call.1} parent=0 // loop_footer
    %s18 = sadd.s32 1, %s14
  $region7: #{tpu_custom_call.1} parent=0 // loop_footer_branch
    %13 = sbr.rel target = $region3
  $region8: #{tpu_custom_call.1} parent=0 // loop_exit
    _

</llo_original>
